<compile_context>
chip_gen: v7x
topology: tpu7x:2x2x1
jax: 0.10.0
libtpu: 0.0.40
codegen_flags: <defaults>
</compile_context>

<pallas_src>
import jax
import jax.numpy as jnp
import numpy as np
from jax.experimental import pallas as pl
from jax.experimental.pallas import tpu as pltpu


def _ceil_div(a, b):
    return -(-a // b)


def _round_up(a, b):
    return _ceil_div(a, b) * b


# ---------------------------------------------------------------------------
# Pallas kernel: direct convolution as accumulated per-tap GEMMs
# ---------------------------------------------------------------------------
def _make_conv_kernel(KH, KW, sh, sw, OH, OWp, Cin, Cout_p):
    """Accumulate KH*KW shifted (OH*OWp, Cin) @ (Cin, Cout_p) GEMMs on the MXU."""
    M = OH * OWp
    taps = [(kh, kw) for kh in range(KH) for kw in range(KW)]

    def kernel(x_ref, w_ref, b_ref, o_ref):
        # x_ref: (sh*sw, PH, PW, Cin)   stride-phase decomposed padded image
        # w_ref: (KH*KW, Cin, Cout_p)   weights, Cout padded to 128 lanes
        # b_ref: (1, Cout_p)
        # o_ref: (1, M, Cout_p)         lane/sublane-aligned output slab
        acc = jnp.broadcast_to(b_ref[...], (M, Cout_p)).astype(jnp.float32)
        for t, (kh, kw) in enumerate(taps):
            p, q = kh % sh, kw % sw          # stride phase of this tap
            r, c = kh // sh, kw // sw        # offset inside the phase image
            a = x_ref[p * sw + q, r:r + OH, c:c + OWp, :].reshape(M, Cin)
            acc = acc + jnp.dot(a, w_ref[t], preferred_element_type=jnp.float32)
        o_ref[0] = acc.astype(o_ref.dtype)

    return kernel


def _pallas_conv(phases, wmat, bvec, KH, KW, sh, sw, OH, OWp):
    """phases: (N, sh*sw, PH, PW, Cin), wmat: (KH*KW, Cin, Cout_p),
    bvec: (1, Cout_p)  ->  (N, OH*OWp, Cout_p) float32."""
    N, SHSW, PH, PW, Cin = phases.shape
    Cout_p = wmat.shape[-1]
    M = OH * OWp
    phases_flat = phases.reshape(N * SHSW, PH, PW, Cin)

    kernel = _make_conv_kernel(KH, KW, sh, sw, OH, OWp, Cin, Cout_p)
    flops = 2 * N * M * KH * KW * Cin * Cout_p
    bytes_accessed = 4 * (phases_flat.size + wmat.size + bvec.size + N * M * Cout_p)

    # TODO(synk): for large feature maps, add grid axes tiling output rows and
    # Cout (currently the whole per-image block is VMEM-resident; fine here).
    return pl.pallas_call(
        kernel,
        out_shape=jax.ShapeDtypeStruct((N, M, Cout_p), jnp.float32),
        grid_spec=pltpu.PrefetchScalarGridSpec(
            num_scalar_prefetch=0,
            grid=(N,),
            in_specs=[
                pl.BlockSpec((SHSW, PH, PW, Cin), lambda n: (n, 0, 0, 0)),
                pl.BlockSpec((KH * KW, Cin, Cout_p), lambda n: (0, 0, 0)),
                pl.BlockSpec((1, Cout_p), lambda n: (0, 0)),
            ],
            out_specs=pl.BlockSpec((1, M, Cout_p), lambda n: (n, 0, 0)),
        ),
        compiler_params=pltpu.CompilerParams(
            dimension_semantics=("parallel",),
            vmem_limit_bytes=32 * 1024 * 1024,
        ),
        cost_estimate=pl.CostEstimate(
            flops=flops, transcendentals=0, bytes_accessed=bytes_accessed),
    )(phases_flat, wmat, bvec)


# ---------------------------------------------------------------------------
# Wrappers: conv2d (NCHW / OIHW) and conv_transpose2d (NCHW / IOHW)
# ---------------------------------------------------------------------------
def conv2d_nchw(x, w, bias, stride, padding):
    """x: (N, Cin, H, W), w: (Cout, Cin, KH, KW) (PyTorch OIHW), bias: (Cout,)."""
    N, Cin, H, W = x.shape
    Cout, _, KH, KW = w.shape
    sh, sw = stride
    ph, pw = padding
    OH = (H + 2 * ph - KH) // sh + 1
    OW = (W + 2 * pw - KW) // sw + 1
    assert OH > 0 and OW > 0

    OWp = _round_up(OW, 8)            # sublane-aligned output rows per image
    Cout_p = _round_up(Cout, 128)     # lane-dense output channels

    max_r, max_c = (KH - 1) // sh, (KW - 1) // sw
    PH = max(_ceil_div(H + 2 * ph, sh), max_r + OH)
    PW = max(_ceil_div(W + 2 * pw, sw), max_c + OWp)

    # NCHW -> NHWC, pad spatially, regroup into stride phases so every
    # kernel-tap read is a contiguous window (no strided in-kernel access).
    x_nhwc = jnp.transpose(x, (0, 2, 3, 1))
    x_pad = jnp.pad(
        x_nhwc,
        ((0, 0), (ph, PH * sh - H - ph), (pw, PW * sw - W - pw), (0, 0)))
    phases = (x_pad.reshape(N, PH, sh, PW, sw, Cin)
              .transpose(0, 2, 4, 1, 3, 5)
              .reshape(N, sh * sw, PH, PW, Cin))

    # OIHW -> (KH*KW, Cin, Cout_p); bias -> (1, Cout_p); both zero-padded.
    wmat = jnp.transpose(w, (2, 3, 1, 0)).reshape(KH * KW, Cin, Cout)
    wmat = jnp.pad(wmat, ((0, 0), (0, 0), (0, Cout_p - Cout)))
    bvec = jnp.pad(bias, (0, Cout_p - Cout)).reshape(1, Cout_p)

    out = _pallas_conv(phases, wmat, bvec, KH, KW, sh, sw, OH, OWp)
    out = out.reshape(N, OH, OWp, Cout_p)[:, :, :OW, :Cout]
    return jnp.transpose(out, (0, 3, 1, 2))


def conv_transpose2d_nchw(x, w, bias, stride, padding):
    """PyTorch ConvTranspose2d, specialised for kernel=4 / stride=2 / padding=1
    via sub-pixel decomposition: each output parity phase (pa, pb) is a 2x2
    stride-1 conv over the 1-padded (un-dilated) input."""
    N, Cin, H, W = x.shape
    _, Cout, KH, KW = w.shape
    assert (KH, KW) == (4, 4) and tuple(stride) == (2, 2) and tuple(padding) == (1, 1)

    # Spatially flip and swap to OIHW.
    wf = jnp.transpose(jnp.flip(w, axis=(2, 3)), (1, 0, 2, 3))  # (Cout, Cin, 4, 4)
    xp = jnp.pad(x, ((0, 0), (0, 0), (1, 1), (1, 1)))

    phase_outs = []
    for pa in range(2):
        for pb in range(2):
            w_ab = wf[:, :, pa::2, pb::2]                     # (Cout, Cin, 2, 2)
            x_ab = xp[:, :, pa:pa + H + 1, pb:pb + W + 1]     # (N, Cin, H+1, W+1)
            phase_outs.append(conv2d_nchw(x_ab, w_ab, bias, (1, 1), (0, 0)))

    # Interleave: out[:, :, 2i+pa, 2j+pb] = phase_outs[pa*2+pb][:, :, i, j]
    po = jnp.stack(phase_outs, axis=0).reshape(2, 2, N, Cout, H, W)
    return po.transpose(2, 3, 4, 0, 5, 1).reshape(N, Cout, 2 * H, 2 * W)


# ---------------------------------------------------------------------------
# Fit module (JAX / Pallas port)
# ---------------------------------------------------------------------------
class Fit:
    def __init__(self, s_shape, t_shape, factor=1, key=None):
        if key is None:
            key = jax.random.PRNGKey(0)
        _, s_C, s_H, s_W = s_shape
        _, t_C, t_H, t_W = t_shape
        out_C = t_C // factor

        if s_H == 2 * t_H:
            self.mode, self.kernel, self.stride, self.padding = "conv", (3, 3), (2, 2), (1, 1)
            wshape = (out_C, s_C, 3, 3)
        elif s_H * 2 == t_H:
            self.mode, self.kernel, self.stride, self.padding = "deconv", (4, 4), (2, 2), (1, 1)
            wshape = (s_C, out_C, 4, 4)
        elif s_H == t_H:
            self.mode, self.kernel, self.stride, self.padding = "conv", (1, 1), (1, 1), (0, 0)
            wshape = (out_C, s_C, 1, 1)
        else:
            kh, kw_ = 1 + s_H - t_H, 1 + s_W - t_W
            assert kh > 0 and kw_ > 0, "Fit: unsupported (s_shape, t_shape) pair"
            self.mode, self.kernel, self.stride, self.padding = "conv", (kh, kw_), (1, 1), (0, 0)
            wshape = (out_C, s_C, kh, kw_)

        # Deterministic PyTorch-style init (uniform +- 1/sqrt(fan_in)).
        fan_in = s_C * self.kernel[0] * self.kernel[1]
        bound = 1.0 / np.sqrt(fan_in)
        kw_key, kb_key = jax.random.split(key)
        self.w = jax.random.uniform(kw_key, wshape, jnp.float32, -bound, bound)
        self.b = jax.random.uniform(kb_key, (out_C,), jnp.float32, -bound, bound)

        if self.mode == "conv":
            fwd = lambda x, w, b: conv2d_nchw(x, w, b, self.stride, self.padding)
        else:
            fwd = lambda x, w, b: conv_transpose2d_nchw(x, w, b, self.stride, self.padding)
        self._fwd = jax.jit(fwd)

    def __call__(self, x):
        return self._fwd(x, self.w, self.b)


# ---------------------------------------------------------------------------
# Pure-JAX references (for correctness check only)
# ---------------------------------------------------------------------------
def _ref_conv(x, w, b, stride, padding):
    out = jax.lax.conv_general_dilated(
        x, w, stride,
        [(padding[0], padding[0]), (padding[1], padding[1])],
        dimension_numbers=("NCHW", "OIHW", "NCHW"),
    )
    return out + b.reshape(1, -1, 1, 1)


def _ref_deconv(x, w, b, stride, padding):
    KH, KW = w.shape[2], w.shape[3]
    w_conv = jnp.flip(w, (2, 3)).transpose(1, 0, 2, 3)
    out = jax.lax.conv_general_dilated(
        x, w_conv, (1, 1),
        [(KH - 1 - padding[0],) * 2, (KW - 1 - padding[1],) * 2],
        lhs_dilation=stride,
        dimension_numbers=("NCHW", "OIHW", "NCHW"),
    )
    return out + b.reshape(1, -1, 1, 1)


if __name__ == "__main__":
    key = jax.random.PRNGKey(0)
    kx, kp = jax.random.split(key)
    s_shape = (2, 4, 16, 16)
    x = jax.random.normal(kx, s_shape, jnp.float32)

    # Exercise all four branches of Fit.__init__.
    t_shapes = [
        (2, 8, 8, 8),    # s_H == 2*t_H  -> 3x3 stride-2 conv
        (2, 8, 32, 32),  # s_H*2 == t_H  -> 4x4 stride-2 transposed conv
        (2, 8, 16, 16),  # s_H == t_H    -> 1x1 conv
        (2, 8, 12, 12),  # else          -> (5,5) valid conv
    ]

    ok = True
    for t_shape in t_shapes:
        fit = Fit(s_shape, t_shape, factor=1, key=kp)
        out = jax.block_until_ready(fit(x))
        assert out.shape == t_shape, (out.shape, t_shape)
        if fit.mode == "conv":
            ref = _ref_conv(x, fit.w, fit.b, fit.stride, fit.padding)
        else:
            ref = _ref_deconv(x, fit.w, fit.b, fit.stride, fit.padding)
        ref = jax.block_until_ready(ref)
        ok &= bool(np.allclose(np.asarray(out), np.asarray(ref), rtol=1e-3, atol=1e-4))

    if ok:
        print("KERNEL_OK")
    else:
        print("KERNEL_MISMATCH")
</pallas_src>

<mosaic_0001>
module attributes {stable_mosaic.version = 11 : i64} {
  func.func @kernel(%arg0: i32, %arg1: memref<4x9x9x4xf32, #tpu.memory_space<vmem>>, %arg2: memref<9x4x128xf32, #tpu.memory_space<vmem>>, %arg3: memref<1x128xf32, #tpu.memory_space<vmem>>, %arg4: memref<1x64x128xf32, #tpu.memory_space<vmem>>) attributes {dimension_semantics = [#tpu.dimension_semantics<parallel>], iteration_bounds = array<i64: 2>, scalar_prefetch = 0 : i64, scratch_operands = 0 : i64, tpu.core_type = #tpu.core_type<tc>, window_params = [{transform_indices = @transform_0, window_bounds = array<i64: 4, 9, 9, 4>}, {pipeline_mode = #tpu.pipeline_mode<synchronous>, transform_indices = @transform_1, window_bounds = array<i64: 9, 4, 128>}, {pipeline_mode = #tpu.pipeline_mode<synchronous>, transform_indices = @transform_2, window_bounds = array<i64: 1, 128>}, {transform_indices = @transform_3, window_bounds = array<i64: 1, 64, 128>}]} {
    %c0 = arith.constant 0 : index
    %c0_0 = arith.constant 0 : index
    %0 = vector.load %arg3[%c0, %c0_0] : memref<1x128xf32, #tpu.memory_space<vmem>>, vector<1x128xf32>
    %1 = vector.shape_cast %0 : vector<1x128xf32> to vector<1x128xf32>
    %2 = vector.broadcast %1 : vector<1x128xf32> to vector<64x128xf32>
    %c0_1 = arith.constant 0 : index
    %c0_2 = arith.constant 0 : index
    %c0_3 = arith.constant 0 : index
    %c0_4 = arith.constant 0 : index
    %3 = vector.load %arg1[%c0_1, %c0_2, %c0_3, %c0_4] : memref<4x9x9x4xf32, #tpu.memory_space<vmem>>, vector<1x8x8x4xf32>
    %4 = vector.shape_cast %3 : vector<1x8x8x4xf32> to vector<8x8x4xf32>
    %5 = vector.shape_cast %4 : vector<8x8x4xf32> to vector<64x4xf32>
    %c0_5 = arith.constant 0 : index
    %c0_6 = arith.constant 0 : index
    %c0_7 = arith.constant 0 : index
    %6 = vector.load %arg2[%c0_5, %c0_6, %c0_7] : memref<9x4x128xf32, #tpu.memory_space<vmem>>, vector<1x4x128xf32>
    %7 = vector.shape_cast %6 : vector<1x4x128xf32> to vector<4x128xf32>
    %cst = arith.constant dense<0.000000e+00> : vector<64x128xf32>
    %8 = tpu.matmul %5, %7, %cst {dimension_numbers = #tpu.dot_dimension_numbers<[1], [0], [0], [1], [0, 0, 1, 1], [], []>} : vector<64x4xf32>, vector<4x128xf32>, vector<64x128xf32> -> vector<64x128xf32>
    %9 = arith.addf %2, %8 : vector<64x128xf32>
    %c1 = arith.constant 1 : index
    %c0_8 = arith.constant 0 : index
    %c0_9 = arith.constant 0 : index
    %c0_10 = arith.constant 0 : index
    %10 = vector.load %arg1[%c1, %c0_8, %c0_9, %c0_10] : memref<4x9x9x4xf32, #tpu.memory_space<vmem>>, vector<1x8x8x4xf32>
    %11 = vector.shape_cast %10 : vector<1x8x8x4xf32> to vector<8x8x4xf32>
    %12 = vector.shape_cast %11 : vector<8x8x4xf32> to vector<64x4xf32>
    %c1_11 = arith.constant 1 : index
    %c0_12 = arith.constant 0 : index
    %c0_13 = arith.constant 0 : index
    %13 = vector.load %arg2[%c1_11, %c0_12, %c0_13] : memref<9x4x128xf32, #tpu.memory_space<vmem>>, vector<1x4x128xf32>
    %14 = vector.shape_cast %13 : vector<1x4x128xf32> to vector<4x128xf32>
    %cst_14 = arith.constant dense<0.000000e+00> : vector<64x128xf32>
    %15 = tpu.matmul %12, %14, %cst_14 {dimension_numbers = #tpu.dot_dimension_numbers<[1], [0], [0], [1], [0, 0, 1, 1], [], []>} : vector<64x4xf32>, vector<4x128xf32>, vector<64x128xf32> -> vector<64x128xf32>
    %16 = arith.addf %9, %15 : vector<64x128xf32>
    %c0_15 = arith.constant 0 : index
    %c0_16 = arith.constant 0 : index
    %c1_17 = arith.constant 1 : index
    %c0_18 = arith.constant 0 : index
    %17 = vector.load %arg1[%c0_15, %c0_16, %c1_17, %c0_18] : memref<4x9x9x4xf32, #tpu.memory_space<vmem>>, vector<1x8x8x4xf32>
    %18 = vector.shape_cast %17 : vector<1x8x8x4xf32> to vector<8x8x4xf32>
    %19 = vector.shape_cast %18 : vector<8x8x4xf32> to vector<64x4xf32>
    %c2 = arith.constant 2 : index
    %c0_19 = arith.constant 0 : index
    %c0_20 = arith.constant 0 : index
    %20 = vector.load %arg2[%c2, %c0_19, %c0_20] : memref<9x4x128xf32, #tpu.memory_space<vmem>>, vector<1x4x128xf32>
    %21 = vector.shape_cast %20 : vector<1x4x128xf32> to vector<4x128xf32>
    %cst_21 = arith.constant dense<0.000000e+00> : vector<64x128xf32>
    %22 = tpu.matmul %19, %21, %cst_21 {dimension_numbers = #tpu.dot_dimension_numbers<[1], [0], [0], [1], [0, 0, 1, 1], [], []>} : vector<64x4xf32>, vector<4x128xf32>, vector<64x128xf32> -> vector<64x128xf32>
    %23 = arith.addf %16, %22 : vector<64x128xf32>
    %c2_22 = arith.constant 2 : index
    %c0_23 = arith.constant 0 : index
    %c0_24 = arith.constant 0 : index
    %c0_25 = arith.constant 0 : index
    %24 = vector.load %arg1[%c2_22, %c0_23, %c0_24, %c0_25] : memref<4x9x9x4xf32, #tpu.memory_space<vmem>>, vector<1x8x8x4xf32>
    %25 = vector.shape_cast %24 : vector<1x8x8x4xf32> to vector<8x8x4xf32>
    %26 = vector.shape_cast %25 : vector<8x8x4xf32> to vector<64x4xf32>
    %c3 = arith.constant 3 : index
    %c0_26 = arith.constant 0 : index
    %c0_27 = arith.constant 0 : index
    %27 = vector.load %arg2[%c3, %c0_26, %c0_27] : memref<9x4x128xf32, #tpu.memory_space<vmem>>, vector<1x4x128xf32>
    %28 = vector.shape_cast %27 : vector<1x4x128xf32> to vector<4x128xf32>
    %cst_28 = arith.constant dense<0.000000e+00> : vector<64x128xf32>
    %29 = tpu.matmul %26, %28, %cst_28 {dimension_numbers = #tpu.dot_dimension_numbers<[1], [0], [0], [1], [0, 0, 1, 1], [], []>} : vector<64x4xf32>, vector<4x128xf32>, vector<64x128xf32> -> vector<64x128xf32>
    %30 = arith.addf %23, %29 : vector<64x128xf32>
    %c3_29 = arith.constant 3 : index
    %c0_30 = arith.constant 0 : index
    %c0_31 = arith.constant 0 : index
    %c0_32 = arith.constant 0 : index
    %31 = vector.load %arg1[%c3_29, %c0_30, %c0_31, %c0_32] : memref<4x9x9x4xf32, #tpu.memory_space<vmem>>, vector<1x8x8x4xf32>
    %32 = vector.shape_cast %31 : vector<1x8x8x4xf32> to vector<8x8x4xf32>
    %33 = vector.shape_cast %32 : vector<8x8x4xf32> to vector<64x4xf32>
    %c4 = arith.constant 4 : index
    %c0_33 = arith.constant 0 : index
    %c0_34 = arith.constant 0 : index
    %34 = vector.load %arg2[%c4, %c0_33, %c0_34] : memref<9x4x128xf32, #tpu.memory_space<vmem>>, vector<1x4x128xf32>
    %35 = vector.shape_cast %34 : vector<1x4x128xf32> to vector<4x128xf32>
    %cst_35 = arith.constant dense<0.000000e+00> : vector<64x128xf32>
    %36 = tpu.matmul %33, %35, %cst_35 {dimension_numbers = #tpu.dot_dimension_numbers<[1], [0], [0], [1], [0, 0, 1, 1], [], []>} : vector<64x4xf32>, vector<4x128xf32>, vector<64x128xf32> -> vector<64x128xf32>
    %37 = arith.addf %30, %36 : vector<64x128xf32>
    %c2_36 = arith.constant 2 : index
    %c0_37 = arith.constant 0 : index
    %c1_38 = arith.constant 1 : index
    %c0_39 = arith.constant 0 : index
    %38 = vector.load %arg1[%c2_36, %c0_37, %c1_38, %c0_39] : memref<4x9x9x4xf32, #tpu.memory_space<vmem>>, vector<1x8x8x4xf32>
    %39 = vector.shape_cast %38 : vector<1x8x8x4xf32> to vector<8x8x4xf32>
    %40 = vector.shape_cast %39 : vector<8x8x4xf32> to vector<64x4xf32>
    %c5 = arith.constant 5 : index
    %c0_40 = arith.constant 0 : index
    %c0_41 = arith.constant 0 : index
    %41 = vector.load %arg2[%c5, %c0_40, %c0_41] : memref<9x4x128xf32, #tpu.memory_space<vmem>>, vector<1x4x128xf32>
    %42 = vector.shape_cast %41 : vector<1x4x128xf32> to vector<4x128xf32>
    %cst_42 = arith.constant dense<0.000000e+00> : vector<64x128xf32>
    %43 = tpu.matmul %40, %42, %cst_42 {dimension_numbers = #tpu.dot_dimension_numbers<[1], [0], [0], [1], [0, 0, 1, 1], [], []>} : vector<64x4xf32>, vector<4x128xf32>, vector<64x128xf32> -> vector<64x128xf32>
    %44 = arith.addf %37, %43 : vector<64x128xf32>
    %c0_43 = arith.constant 0 : index
    %c1_44 = arith.constant 1 : index
    %c0_45 = arith.constant 0 : index
    %c0_46 = arith.constant 0 : index
    %45 = vector.load %arg1[%c0_43, %c1_44, %c0_45, %c0_46] : memref<4x9x9x4xf32, #tpu.memory_space<vmem>>, vector<1x8x8x4xf32>
    %46 = vector.shape_cast %45 : vector<1x8x8x4xf32> to vector<8x8x4xf32>
    %47 = vector.shape_cast %46 : vector<8x8x4xf32> to vector<64x4xf32>
    %c6 = arith.constant 6 : index
    %c0_47 = arith.constant 0 : index
    %c0_48 = arith.constant 0 : index
    %48 = vector.load %arg2[%c6, %c0_47, %c0_48] : memref<9x4x128xf32, #tpu.memory_space<vmem>>, vector<1x4x128xf32>
    %49 = vector.shape_cast %48 : vector<1x4x128xf32> to vector<4x128xf32>
    %cst_49 = arith.constant dense<0.000000e+00> : vector<64x128xf32>
    %50 = tpu.matmul %47, %49, %cst_49 {dimension_numbers = #tpu.dot_dimension_numbers<[1], [0], [0], [1], [0, 0, 1, 1], [], []>} : vector<64x4xf32>, vector<4x128xf32>, vector<64x128xf32> -> vector<64x128xf32>
    %51 = arith.addf %44, %50 : vector<64x128xf32>
    %c1_50 = arith.constant 1 : index
    %c1_51 = arith.constant 1 : index
    %c0_52 = arith.constant 0 : index
    %c0_53 = arith.constant 0 : index
    %52 = vector.load %arg1[%c1_50, %c1_51, %c0_52, %c0_53] : memref<4x9x9x4xf32, #tpu.memory_space<vmem>>, vector<1x8x8x4xf32>
    %53 = vector.shape_cast %52 : vector<1x8x8x4xf32> to vector<8x8x4xf32>
    %54 = vector.shape_cast %53 : vector<8x8x4xf32> to vector<64x4xf32>
    %c7 = arith.constant 7 : index
    %c0_54 = arith.constant 0 : index
    %c0_55 = arith.constant 0 : index
    %55 = vector.load %arg2[%c7, %c0_54, %c0_55] : memref<9x4x128xf32, #tpu.memory_space<vmem>>, vector<1x4x128xf32>
    %56 = vector.shape_cast %55 : vector<1x4x128xf32> to vector<4x128xf32>
    %cst_56 = arith.constant dense<0.000000e+00> : vector<64x128xf32>
    %57 = tpu.matmul %54, %56, %cst_56 {dimension_numbers = #tpu.dot_dimension_numbers<[1], [0], [0], [1], [0, 0, 1, 1], [], []>} : vector<64x4xf32>, vector<4x128xf32>, vector<64x128xf32> -> vector<64x128xf32>
    %58 = arith.addf %51, %57 : vector<64x128xf32>
    %c0_57 = arith.constant 0 : index
    %c1_58 = arith.constant 1 : index
    %c1_59 = arith.constant 1 : index
    %c0_60 = arith.constant 0 : index
    %59 = vector.load %arg1[%c0_57, %c1_58, %c1_59, %c0_60] : memref<4x9x9x4xf32, #tpu.memory_space<vmem>>, vector<1x8x8x4xf32>
    %60 = vector.shape_cast %59 : vector<1x8x8x4xf32> to vector<8x8x4xf32>
    %61 = vector.shape_cast %60 : vector<8x8x4xf32> to vector<64x4xf32>
    %c8 = arith.constant 8 : index
    %c0_61 = arith.constant 0 : index
    %c0_62 = arith.constant 0 : index
    %62 = vector.load %arg2[%c8, %c0_61, %c0_62] : memref<9x4x128xf32, #tpu.memory_space<vmem>>, vector<1x4x128xf32>
    %63 = vector.shape_cast %62 : vector<1x4x128xf32> to vector<4x128xf32>
    %cst_63 = arith.constant dense<0.000000e+00> : vector<64x128xf32>
    %64 = tpu.matmul %61, %63, %cst_63 {dimension_numbers = #tpu.dot_dimension_numbers<[1], [0], [0], [1], [0, 0, 1, 1], [], []>} : vector<64x4xf32>, vector<4x128xf32>, vector<64x128xf32> -> vector<64x128xf32>
    %65 = arith.addf %58, %64 : vector<64x128xf32>
    %c0_64 = arith.constant 0 : index
    %c0_65 = arith.constant 0 : index
    %c0_66 = arith.constant 0 : index
    %66 = vector.load %arg4[%c0_64, %c0_65, %c0_66] : memref<1x64x128xf32, #tpu.memory_space<vmem>>, vector<1x64x128xf32>
    %67 = vector.shape_cast %66 : vector<1x64x128xf32> to vector<64x128xf32>
    %68 = vector.shape_cast %65 : vector<64x128xf32> to vector<1x64x128xf32>
    tpu.vector_store %arg4[%c0_64, %c0_65, %c0_66], %68 {strides = array<i32>} : memref<1x64x128xf32, #tpu.memory_space<vmem>>, vector<1x64x128xf32>,
    return
  }
  func.func @transform_0(%arg0: i32) -> (i32, i32, i32, i32) {
    %c0_i32 = arith.constant 0 : i32
    %c0_i32_0 = arith.constant 0 : i32
    %c0_i32_1 = arith.constant 0 : i32
    %c0_i32_2 = arith.constant 0 : i32
    return %arg0, %c0_i32, %c0_i32_0, %c0_i32_1 : i32, i32, i32, i32
  }
  func.func @transform_1(%arg0: i32) -> (i32, i32, i32) {
    %c0_i32 = arith.constant 0 : i32
    %c0_i32_0 = arith.constant 0 : i32
    %c0_i32_1 = arith.constant 0 : i32
    %c0_i32_2 = arith.constant 0 : i32
    return %c0_i32, %c0_i32_0, %c0_i32_1 : i32, i32, i32
  }
  func.func @transform_2(%arg0: i32) -> (i32, i32) {
    %c0_i32 = arith.constant 0 : i32
    %c0_i32_0 = arith.constant 0 : i32
    %c0_i32_1 = arith.constant 0 : i32
    return %c0_i32, %c0_i32_0 : i32, i32
  }
  func.func @transform_3(%arg0: i32) -> (i32, i32, i32) {
    %c0_i32 = arith.constant 0 : i32
    %c0_i32_0 = arith.constant 0 : i32
    %c0_i32_1 = arith.constant 0 : i32
    return %arg0, %c0_i32, %c0_i32_0 : i32, i32, i32
  }
}

</mosaic_0001>

<llo_original>
// kernel: _lambda_.1
$region0: #{_lambda_.1}
  #allocation0 [shape = 'u32[]', space=smem, size = 0x4, offset = 0x4, fixed_abs, tag = 'smem constant byte address 0x4 - core index']
  #allocation1 [shape = 'u32[144,128]{1,0:T(1,128)}', space=vmem, size = 0x12000, scoped, tag = 'internal scratch']
  %s0 = inlined_call_operand.vmem [shape: f32[8,9,9,4], index: 0, kind: input, shape index: {}]
  %s1 = inlined_call_operand.vmem [shape: f32[9,4,128], index: 1, kind: input, shape index: {}]
  %s2 = inlined_call_operand.vmem [shape: f32[1,128], index: 2, kind: input, shape index: {}]
  %s3 = inlined_call_operand.vmem [shape: f32[2,64,128], index: 3, kind: output, shape index: {}]
  %s4 = sld [smem:[#allocation0]]
  $region45: #{_lambda_.1} parent=0
    _
  %s6 = ssub.s32 1, %s4
  %s7 = scalar_select 0, %s6, %s4
  loop: start=0, step=1, limit=4
  $region2: #{_lambda_.1} parent=0 // loop_pre_header
    _
  $region3: #{_lambda_.1} parent=0 // loop_header
    %s9 = sphi 0, %s13
    %p10 = scmp.ge.s32.totalorder %s9, 4
    %s19 = sphi 0, %s21
    %s22 = sphi 0, %s19
    %s23 = sphi 0, %s22
    %s39 = sphi 0, %s23
    %s43 = sphi 0, %s43
    %s45 = sphi 0, %s43
    %s46 = sphi 0, %s45
    %s60 = sphi 0, %s46
    %s64 = sphi 0, %s64
    %s66 = sphi 0, %s64
    %s67 = sphi 0, %s66
    %s81 = sphi 0, %s67
    %s87 = sphi 0, %s89
    %s90 = sphi 0, %s87
    %s91 = sphi 0, %s90
    %s107 = sphi 0, %s91
  $region4: #{_lambda_.1} parent=0 // loop_header_branch
    %12 = sbr.rel (%p10) target = $region8
  $region5: #{_lambda_.1} parent=0 // loop_body
    %s14 = ssub.s32 %s9, 1
    %s15 = ssub.s32 %s9, 2
    %s16 = sadd.s32 %s9, 1
    %s17 = ssub.s32 %s9, %s16
    %p18 = scmp.eq.s32.totalorder %s17, 0
    %s20 = sadd.s32 %s19, 1
    %s21 = scalar_select %p18, %s19, %s20
    %p24 = pneg %p18
    %p25 = scmp.eq.s32.totalorder %s9, 1
    %p26 = por %p24, %p25
    %p27 = scmp.ne.s32.totalorder %s19, %s22
    %p28 = scmp.eq.s32.totalorder %s9, 0
    %p29 = por %p27, %p28
    %p30 = scmp.ne.s32.totalorder %s19, %s22
    %p31 = scmp.eq.s32.totalorder %s14, 1
    %p32 = por %p30, %p31
    %p33 = scmp.ne.s32.totalorder %s22, %s23
    %p34 = scmp.eq.s32.totalorder %s14, 0
    %p35 = por %p33, %p34
    %p36 = scmp.ne.s32.totalorder %s22, %s23
    %p37 = scmp.eq.s32.totalorder %s15, 1
    %p38 = por %p36, %p37
    %p40 = scmp.ne.s32.totalorder %s23, %s39
    %p41 = scmp.eq.s32.totalorder %s15, 0
    %p42 = por %p40, %p41
    %s44 = sadd.s32 %s43, 1
    %p47 = scmp.eq.s32.totalorder %s9, 1
    %p48 = scmp.ne.s32.totalorder %s43, %s45
    %p49 = scmp.eq.s32.totalorder %s9, 0
    %p50 = por %p48, %p49
    %p51 = scmp.ne.s32.totalorder %s43, %s45
    %p52 = scmp.eq.s32.totalorder %s14, 1
    %p53 = por %p51, %p52
    %p54 = scmp.ne.s32.totalorder %s45, %s46
    %p55 = scmp.eq.s32.totalorder %s14, 0
    %p56 = por %p54, %p55
    %p57 = scmp.ne.s32.totalorder %s45, %s46
    %p58 = scmp.eq.s32.totalorder %s15, 1
    %p59 = por %p57, %p58
    %p61 = scmp.ne.s32.totalorder %s46, %s60
    %p62 = scmp.eq.s32.totalorder %s15, 0
    %p63 = por %p61, %p62
    %s65 = sadd.s32 %s64, 1
    %p68 = scmp.eq.s32.totalorder %s9, 1
    %p69 = scmp.ne.s32.totalorder %s64, %s66
    %p70 = scmp.eq.s32.totalorder %s9, 0
    %p71 = por %p69, %p70
    %p72 = scmp.ne.s32.totalorder %s64, %s66
    %p73 = scmp.eq.s32.totalorder %s14, 1
    %p74 = por %p72, %p73
    %p75 = scmp.ne.s32.totalorder %s66, %s67
    %p76 = scmp.eq.s32.totalorder %s14, 0
    %p77 = por %p75, %p76
    %p78 = scmp.ne.s32.totalorder %s66, %s67
    %p79 = scmp.eq.s32.totalorder %s15, 1
    %p80 = por %p78, %p79
    %p82 = scmp.ne.s32.totalorder %s67, %s81
    %p83 = scmp.eq.s32.totalorder %s15, 0
    %p84 = por %p82, %p83
    %s85 = ssub.s32 %s9, %s16
    %p86 = scmp.eq.s32.totalorder %s85, 0
    %s88 = sadd.s32 %s87, 1
    %s89 = scalar_select %p86, %s87, %s88
    %p92 = pneg %p86
    %p93 = scmp.eq.s32.totalorder %s9, 1
    %p94 = por %p92, %p93
    %p95 = scmp.ne.s32.totalorder %s87, %s90
    %p96 = scmp.eq.s32.totalorder %s9, 0
    %p97 = por %p95, %p96
    %p98 = scmp.ne.s32.totalorder %s87, %s90
    %p99 = scmp.eq.s32.totalorder %s14, 1
    %p100 = por %p98, %p99
    %p101 = scmp.ne.s32.totalorder %s90, %s91
    %p102 = scmp.eq.s32.totalorder %s14, 0
    %p103 = por %p101, %p102
    %p104 = scmp.ne.s32.totalorder %s90, %s91
    %p105 = scmp.eq.s32.totalorder %s15, 1
    %p106 = por %p104, %p105
    %p108 = scmp.ne.s32.totalorder %s91, %s107
    %p109 = scmp.eq.s32.totalorder %s15, 0
    %p110 = por %p108, %p109
    %p111 = scmp.le.s32.totalorder 1, %s9
    %p112 = scmp.lt.s32.totalorder %s9, 3
    %p113 = pnand %p111, %p112
    %p114 = pneg %p113
    // Predicated region
    $region9: #{_lambda_.1} parent=5 // pred_check
      _
    $region10: #{_lambda_.1} parent=5 // pred_check_branch
      %116 = sbr.rel (%p113) target = $region12
    $region11: #{_lambda_.1} parent=5 // pred_region
      %s117 = ssub.s32 %s9, 1
      // Predicated region
      $region13: #{_lambda_.1} parent=11 // pred_check
        %p118 = pneg %p56
      $region14: #{_lambda_.1} parent=11 // pred_check_branch
        %120 = sbr.rel (%p118) target = $region16
      $region15: #{_lambda_.1} parent=11 // pred_region
        _
      $region16: #{_lambda_.1} parent=11 // pred_fallthru
        _
      // Predicated region
      $region17: #{_lambda_.1} parent=11 // pred_check
        %p121 = pneg %p77
      $region18: #{_lambda_.1} parent=11 // pred_check_branch
        %123 = sbr.rel (%p121) target = $region20
      $region19: #{_lambda_.1} parent=11 // pred_region
        _
      $region20: #{_lambda_.1} parent=11 // pred_fallthru
        _
    $region12: #{_lambda_.1} parent=5 // pred_fallthru
      _
    %p124 = scmp.lt.s32.totalorder %s9, 2
    // Predicated region
    $region21: #{_lambda_.1} parent=5 // pred_check
      %p125 = pneg %p124
    $region22: #{_lambda_.1} parent=5 // pred_check_branch
      %127 = sbr.rel (%p125) target = $region24
    $region23: #{_lambda_.1} parent=5 // pred_region
      // Predicated region
      $region25: #{_lambda_.1} parent=23 // pred_check
        %p128 = pneg %p29
      $region26: #{_lambda_.1} parent=23 // pred_check_branch
        %130 = sbr.rel (%p128) target = $region28
      $region27: #{_lambda_.1} parent=23 // pred_region
        %s131 = smul.u32 4, %s9
        %p132 = scmp.lt.s32.totalorder %s131, 7
        %s133 = scalar_select %p132, %s131, 7
        %s134 = smul.addr %s133, 18
        %s135 = smul.addr %s134, 8
        %s136 = scalar_lea.vmem %s0, %s135
        %s137 = smul.u32 4, %s9
      $region28: #{_lambda_.1} parent=23 // pred_fallthru
        _
    $region24: #{_lambda_.1} parent=5 // pred_fallthru
      _
    %p138 = scmp.le.s32.totalorder 1, %s9
    %p139 = scmp.lt.s32.totalorder %s9, 3
    %p140 = pnand %p138, %p139
    %p141 = pneg %p140
    // Predicated region
    $region29: #{_lambda_.1} parent=5 // pred_check
      _
    $region30: #{_lambda_.1} parent=5 // pred_check_branch
      %143 = sbr.rel (%p140) target = $region32
    $region31: #{_lambda_.1} parent=5 // pred_region
      %s144 = ssub.s32 %s9, 1
      %s145 = smul.u32 4, %s14
      %p146 = scmp.lt.s32.totalorder %s145, 7
      %s147 = scalar_select %p146, %s145, 7
      %s148 = smul.addr %s147, 18
      %s149 = smul.addr %s148, 8
      %s150 = scalar_lea.vmem %s0, %s149
      %p151 = pneg %p35
      %p152 = pneg %p32
      %p153 = pneg %p56
      %p154 = pneg %p53
      %p155 = pneg %p77
      %p156 = pneg %p74
      %p157 = pneg %p103
      %p158 = pneg %p100
      %p159 = scmp.lt.s32.totalorder %s14, 1
      %s160 = scalar_select %p159, %s14, 1
      %s161 = smul.addr %s160, 8
      %s162 = smul.addr %s161, 8
      %s163 = scalar_lea.vmem %s3, %s162
      %s164 = smul.u32 4, %s14
      %p165 = scmp.lt.s32.totalorder %s164, 7
      %s166 = scalar_select %p165, %s164, 7
      %s167 = smul.addr %s166, 18
      %s168 = smul.addr %s167, 8
      %s169 = scalar_lea.vmem %s0, %s168
      %s170 = smul.u32 4, %s14
      %p171 = scmp.lt.s32.totalorder %s14, 1
      %s172 = scalar_select %p171, %s14, 1
      %s173 = smul.addr %s172, 8
      %s174 = smul.addr %s173, 8
      %s175 = scalar_lea.vmem %s3, %s174
      %v176 = vld [vmem:[%s2] sm:$0x1]
      %v178 = vlaneseq
      %v179 = vshrl.u32 %v178, 7
      %v180 = vsub.s32 0, %v179
      %v181 = vrot.slane %v176, %v180
      %v183 = vld [vmem:[%s169] sm:$0xff]
      %v184 = vld [vmem:[%s169 + $0x10] sm:$0xff]
      %v185 = vld [vmem:[%s169 + $0x20] sm:$0xff]
      %v186 = vld [vmem:[%s169 + $0x30] sm:$0xff]
      %v187 = vld [vmem:[%s169 + $0x40] sm:$0xff]
      %v188 = vld [vmem:[%s169 + $0x50] sm:$0xff]
      %v189 = vld [vmem:[%s169 + $0x60] sm:$0xff]
      %v190 = vld [vmem:[%s169 + $0x70] sm:$0xff]
      %v191 = vld [vmem:[%s1] sm:$0xf]
      %vm192 = vcmask 31744
      %v194 = vsel %vm192, %v183, 0
      %v197 = vsel %vm192, %v184, 0
      %v200 = vsel %vm192, %v185, 0
      %v203 = vsel %vm192, %v186, 0
      %v206 = vsel %vm192, %v187, 0
      %v209 = vsel %vm192, %v188, 0
      %v212 = vsel %vm192, %v189, 0
      %v215 = vsel %vm192, %v190, 0
      %vm217 = vcmask 1043456
      %v219 = vsel %vm217, %v191, 0
      %221 = vmatprep.subr.mxu0 0.0
      %222 = vmatpush1.msra.mxu0 %v219
      %223 = vmatprep.subr.mxu0 0.0
      %224 = vmatpush1.msra.mxu0 0.0
      %225 = vmatprep.subr.mxu0 0.0
      %226 = vmatpush1.msra.mxu0 0.0
      %227 = vmatprep.subr.mxu0 0.0
      %228 = vmatpush1.msra.mxu0 0.0
      %229 = vmatprep.subr.mxu0 0.0
      %230 = vmatpush1.msra.mxu0 0.0
      %231 = vmatprep.subr.mxu0 0.0
      %232 = vmatpush1.msra.mxu0 0.0
      %233 = vmatprep.subr.mxu0 0.0
      %234 = vmatpush1.msra.mxu0 0.0
      %235 = vmatprep.subr.mxu0 0.0
      %236 = vmatpush1.msra.mxu0 0.0
      %237 = vmatprep.subr.mxu0 0.0
      %238 = vmatpush1.msra.mxu0 0.0
      %239 = vmatprep.subr.mxu0 0.0
      %240 = vmatpush1.msra.mxu0 0.0
      %241 = vmatprep.subr.mxu0 0.0
      %242 = vmatpush1.msra.mxu0 0.0
      %243 = vmatprep.subr.mxu0 0.0
      %244 = vmatpush1.msra.mxu0 0.0
      %245 = vmatprep.subr.mxu0 0.0
      %246 = vmatpush1.msra.mxu0 0.0
      %247 = vmatprep.subr.mxu0 0.0
      %248 = vmatpush1.msra.mxu0 0.0
      %249 = vmatprep.subr.mxu0 0.0
      %250 = vmatpush1.msra.mxu0 0.0
      %251 = vmatprep.subr.mxu0 0.0
      %252 = vmatpush1.msra.mxu0 0.0
      %253 = vmatprep.subr.mxu0 0.0
      %254 = vmatpush1.msra.mxu0 0.0
      %255 = vmatprep.subr.mxu0 0.0
      %256 = vmatpush1.msra.mxu0 0.0
      %257 = vmatprep.subr.mxu0 0.0
      %258 = vmatpush1.msra.mxu0 0.0
      %259 = vmatprep.subr.mxu0 0.0
      %260 = vmatpush1.msra.mxu0 0.0
      %261 = vmatprep.subr.mxu0 0.0
      %262 = vmatpush1.msra.mxu0 0.0
      %263 = vmatprep.subr.mxu0 0.0
      %264 = vmatpush1.msra.mxu0 0.0
      %265 = vmatprep.subr.mxu0 0.0
      %266 = vmatpush1.msra.mxu0 0.0
      %267 = vmatprep.subr.mxu0 0.0
      %268 = vmatpush1.msra.mxu0 0.0
      %269 = vmatprep.subr.mxu0 0.0
      %270 = vmatpush1.msra.mxu0 0.0
      %271 = vmatprep.subr.mxu0 0.0
      %272 = vmatpush1.msra.mxu0 0.0
      %273 = vmatprep.subr.mxu0 0.0
      %274 = vmatpush1.msra.mxu0 0.0
      %275 = vmatprep.subr.mxu0 0.0
      %276 = vmatpush1.msra.mxu0 0.0
      %277 = vmatprep.subr.mxu0 0.0
      %278 = vmatpush1.msra.mxu0 0.0
      %279 = vmatprep.subr.mxu0 0.0
      %280 = vmatpush1.msra.mxu0 0.0
      %281 = vmatprep.subr.mxu0 0.0
      %282 = vmatpush1.msra.mxu0 0.0
      %283 = vmatprep.subr.mxu0 0.0
      %284 = vmatpush1.msra.mxu0 0.0
      %285 = vmatprep.mubr.f32.mxu0 0.0
      %286 = vmatmul.mubr.f32.gmra.mrb[0].mxu0 %v194
      %v287 = vpop.f32.mrb[0].mxu0
      %v288 = vadd.f32 0.0, %v287
      %v289 = vpop.f32.mrb[0].mxu0
      %290 = vmatprep.mubr.f32.mxu0 0.0
      %291 = vmatmul.mubr.f32.gmra.mrb[0].mxu0 %v197
      %v292 = vpop.f32.mrb[0].mxu0
      %v293 = vadd.f32 0.0, %v292
      %v294 = vpop.f32.mrb[0].mxu0
      %295 = vmatprep.mubr.f32.mxu0 0.0
      %296 = vmatmul.mubr.f32.gmra.mrb[0].mxu0 %v200
      %v297 = vpop.f32.mrb[0].mxu0
      %v298 = vadd.f32 0.0, %v297
      %v299 = vpop.f32.mrb[0].mxu0
      %300 = vmatprep.mubr.f32.mxu0 0.0
      %301 = vmatmul.mubr.f32.gmra.mrb[0].mxu0 %v203
      %v302 = vpop.f32.mrb[0].mxu0
      %v303 = vadd.f32 0.0, %v302
      %v304 = vpop.f32.mrb[0].mxu0
      %305 = vmatprep.mubr.f32.mxu0 0.0
      %306 = vmatmul.mubr.f32.gmra.mrb[0].mxu0 %v206
      %v307 = vpop.f32.mrb[0].mxu0
      %v308 = vadd.f32 0.0, %v307
      %v309 = vpop.f32.mrb[0].mxu0
      %310 = vmatprep.mubr.f32.mxu0 0.0
      %311 = vmatmul.mubr.f32.gmra.mrb[0].mxu0 %v209
      %v312 = vpop.f32.mrb[0].mxu0
      %v313 = vadd.f32 0.0, %v312
      %v314 = vpop.f32.mrb[0].mxu0
      %315 = vmatprep.mubr.f32.mxu0 0.0
      %316 = vmatmul.mubr.f32.gmra.mrb[0].mxu0 %v212
      %v317 = vpop.f32.mrb[0].mxu0
      %v318 = vadd.f32 0.0, %v317
      %v319 = vpop.f32.mrb[0].mxu0
      %320 = vmatprep.mubr.f32.mxu0 0.0
      %321 = vmatmul.mubr.f32.gmra.mrb[0].mxu0 %v215
      %v322 = vpop.f32.mrb[0].mxu0
      %v323 = vadd.f32 0.0, %v322
      %v324 = vpop.f32.mrb[0].mxu0
      %325 = vdwg.mxu0
      %v326 = vadd.f32 %v181, %v288
      %v327 = vadd.f32 %v181, %v293
      %v328 = vadd.f32 %v181, %v298
      %v329 = vadd.f32 %v181, %v303
      %v330 = vadd.f32 %v181, %v308
      %v331 = vadd.f32 %v181, %v313
      %v332 = vadd.f32 %v181, %v318
      %v333 = vadd.f32 %v181, %v323
      %s334 = scalar_lea.vmem %s169, 144
      %v335 = vld [vmem:[%s334] sm:$0xff]
      %v336 = vld [vmem:[%s334 + $0x10] sm:$0xff]
      %v337 = vld [vmem:[%s334 + $0x20] sm:$0xff]
      %v338 = vld [vmem:[%s334 + $0x30] sm:$0xff]
      %v339 = vld [vmem:[%s334 + $0x40] sm:$0xff]
      %v340 = vld [vmem:[%s334 + $0x50] sm:$0xff]
      %v341 = vld [vmem:[%s334 + $0x60] sm:$0xff]
      %v342 = vld [vmem:[%s334 + $0x70] sm:$0xff]
      %s343 = scalar_lea.vmem %s1, 4
      %v344 = vld [vmem:[%s343] sm:$0xf]
      %v346 = vsel %vm192, %v335, 0
      %v349 = vsel %vm192, %v336, 0
      %v352 = vsel %vm192, %v337, 0
      %v355 = vsel %vm192, %v338, 0
      %v358 = vsel %vm192, %v339, 0
      %v361 = vsel %vm192, %v340, 0
      %v364 = vsel %vm192, %v341, 0
      %v367 = vsel %vm192, %v342, 0
      %v370 = vsel %vm217, %v344, 0
      %372 = vmatprep.subr.mxu0 0.0
      %373 = vmatpush1.msra.mxu0 %v370
      %374 = vmatprep.subr.mxu0 0.0
      %375 = vmatpush1.msra.mxu0 0.0
      %376 = vmatprep.subr.mxu0 0.0
      %377 = vmatpush1.msra.mxu0 0.0
      %378 = vmatprep.subr.mxu0 0.0
      %379 = vmatpush1.msra.mxu0 0.0
      %380 = vmatprep.subr.mxu0 0.0
      %381 = vmatpush1.msra.mxu0 0.0
      %382 = vmatprep.subr.mxu0 0.0
      %383 = vmatpush1.msra.mxu0 0.0
      %384 = vmatprep.subr.mxu0 0.0
      %385 = vmatpush1.msra.mxu0 0.0
      %386 = vmatprep.subr.mxu0 0.0
      %387 = vmatpush1.msra.mxu0 0.0
      %388 = vmatprep.subr.mxu0 0.0
      %389 = vmatpush1.msra.mxu0 0.0
      %390 = vmatprep.subr.mxu0 0.0
      %391 = vmatpush1.msra.mxu0 0.0
      %392 = vmatprep.subr.mxu0 0.0
      %393 = vmatpush1.msra.mxu0 0.0
      %394 = vmatprep.subr.mxu0 0.0
      %395 = vmatpush1.msra.mxu0 0.0
      %396 = vmatprep.subr.mxu0 0.0
      %397 = vmatpush1.msra.mxu0 0.0
      %398 = vmatprep.subr.mxu0 0.0
      %399 = vmatpush1.msra.mxu0 0.0
      %400 = vmatprep.subr.mxu0 0.0
      %401 = vmatpush1.msra.mxu0 0.0
      %402 = vmatprep.subr.mxu0 0.0
      %403 = vmatpush1.msra.mxu0 0.0
      %404 = vmatprep.subr.mxu0 0.0
      %405 = vmatpush1.msra.mxu0 0.0
      %406 = vmatprep.subr.mxu0 0.0
      %407 = vmatpush1.msra.mxu0 0.0
      %408 = vmatprep.subr.mxu0 0.0
      %409 = vmatpush1.msra.mxu0 0.0
      %410 = vmatprep.subr.mxu0 0.0
      %411 = vmatpush1.msra.mxu0 0.0
      %412 = vmatprep.subr.mxu0 0.0
      %413 = vmatpush1.msra.mxu0 0.0
      %414 = vmatprep.subr.mxu0 0.0
      %415 = vmatpush1.msra.mxu0 0.0
      %416 = vmatprep.subr.mxu0 0.0
      %417 = vmatpush1.msra.mxu0 0.0
      %418 = vmatprep.subr.mxu0 0.0
      %419 = vmatpush1.msra.mxu0 0.0
      %420 = vmatprep.subr.mxu0 0.0
      %421 = vmatpush1.msra.mxu0 0.0
      %422 = vmatprep.subr.mxu0 0.0
      %423 = vmatpush1.msra.mxu0 0.0
      %424 = vmatprep.subr.mxu0 0.0
      %425 = vmatpush1.msra.mxu0 0.0
      %426 = vmatprep.subr.mxu0 0.0
      %427 = vmatpush1.msra.mxu0 0.0
      %428 = vmatprep.subr.mxu0 0.0
      %429 = vmatpush1.msra.mxu0 0.0
      %430 = vmatprep.subr.mxu0 0.0
      %431 = vmatpush1.msra.mxu0 0.0
      %432 = vmatprep.subr.mxu0 0.0
      %433 = vmatpush1.msra.mxu0 0.0
      %434 = vmatprep.subr.mxu0 0.0
      %435 = vmatpush1.msra.mxu0 0.0
      %436 = vmatprep.mubr.f32.mxu0 0.0
      %437 = vmatmul.mubr.f32.gmra.mrb[0].mxu0 %v346
      %v438 = vpop.f32.mrb[0].mxu0
      %v439 = vadd.f32 0.0, %v438
      %v440 = vpop.f32.mrb[0].mxu0
      %441 = vmatprep.mubr.f32.mxu0 0.0
      %442 = vmatmul.mubr.f32.gmra.mrb[0].mxu0 %v349
      %v443 = vpop.f32.mrb[0].mxu0
      %v444 = vadd.f32 0.0, %v443
      %v445 = vpop.f32.mrb[0].mxu0
      %446 = vmatprep.mubr.f32.mxu0 0.0
      %447 = vmatmul.mubr.f32.gmra.mrb[0].mxu0 %v352
      %v448 = vpop.f32.mrb[0].mxu0
      %v449 = vadd.f32 0.0, %v448
      %v450 = vpop.f32.mrb[0].mxu0
      %451 = vmatprep.mubr.f32.mxu0 0.0
      %452 = vmatmul.mubr.f32.gmra.mrb[0].mxu0 %v355
      %v453 = vpop.f32.mrb[0].mxu0
      %v454 = vadd.f32 0.0, %v453
      %v455 = vpop.f32.mrb[0].mxu0
      %456 = vmatprep.mubr.f32.mxu0 0.0
      %457 = vmatmul.mubr.f32.gmra.mrb[0].mxu0 %v358
      %v458 = vpop.f32.mrb[0].mxu0
      %v459 = vadd.f32 0.0, %v458
      %v460 = vpop.f32.mrb[0].mxu0
      %461 = vmatprep.mubr.f32.mxu0 0.0
      %462 = vmatmul.mubr.f32.gmra.mrb[0].mxu0 %v361
      %v463 = vpop.f32.mrb[0].mxu0
      %v464 = vadd.f32 0.0, %v463
      %v465 = vpop.f32.mrb[0].mxu0
      %466 = vmatprep.mubr.f32.mxu0 0.0
      %467 = vmatmul.mubr.f32.gmra.mrb[0].mxu0 %v364
      %v468 = vpop.f32.mrb[0].mxu0
      %v469 = vadd.f32 0.0, %v468
      %v470 = vpop.f32.mrb[0].mxu0
      %471 = vmatprep.mubr.f32.mxu0 0.0
      %472 = vmatmul.mubr.f32.gmra.mrb[0].mxu0 %v367
      %v473 = vpop.f32.mrb[0].mxu0
      %v474 = vadd.f32 0.0, %v473
      %v475 = vpop.f32.mrb[0].mxu0
      %476 = vdwg.mxu0
      %v477 = vadd.f32 %v326, %v439
      %v478 = vadd.f32 %v327, %v444
      %v479 = vadd.f32 %v328, %v449
      %v480 = vadd.f32 %v329, %v454
      %v481 = vadd.f32 %v330, %v459
      %v482 = vadd.f32 %v331, %v464
      %v483 = vadd.f32 %v332, %v469
      %v484 = vadd.f32 %v333, %v474
      %v485 = vld [vmem:[%s169 + $0x1] sm:$0xff]
      %v486 = vld [vmem:[%s169 + $0x11] sm:$0xff]
      %v487 = vld [vmem:[%s169 + $0x21] sm:$0xff]
      %v488 = vld [vmem:[%s169 + $0x31] sm:$0xff]
      %v489 = vld [vmem:[%s169 + $0x41] sm:$0xff]
      %v490 = vld [vmem:[%s169 + $0x51] sm:$0xff]
      %v491 = vld [vmem:[%s169 + $0x61] sm:$0xff]
      %v492 = vld [vmem:[%s169 + $0x71] sm:$0xff]
      %s493 = scalar_lea.vmem %s1, 8
      %v494 = vld [vmem:[%s493] sm:$0xf]
      %v496 = vsel %vm192, %v485, 0
      %v499 = vsel %vm192, %v486, 0
      %v502 = vsel %vm192, %v487, 0
      %v505 = vsel %vm192, %v488, 0
      %v508 = vsel %vm192, %v489, 0
      %v511 = vsel %vm192, %v490, 0
      %v514 = vsel %vm192, %v491, 0
      %v517 = vsel %vm192, %v492, 0
      %v520 = vsel %vm217, %v494, 0
      %522 = vmatprep.subr.mxu0 0.0
      %523 = vmatpush1.msra.mxu0 %v520
      %524 = vmatprep.subr.mxu0 0.0
      %525 = vmatpush1.msra.mxu0 0.0
      %526 = vmatprep.subr.mxu0 0.0
      %527 = vmatpush1.msra.mxu0 0.0
      %528 = vmatprep.subr.mxu0 0.0
      %529 = vmatpush1.msra.mxu0 0.0
      %530 = vmatprep.subr.mxu0 0.0
      %531 = vmatpush1.msra.mxu0 0.0
      %532 = vmatprep.subr.mxu0 0.0
      %533 = vmatpush1.msra.mxu0 0.0
      %534 = vmatprep.subr.mxu0 0.0
      %535 = vmatpush1.msra.mxu0 0.0
      %536 = vmatprep.subr.mxu0 0.0
      %537 = vmatpush1.msra.mxu0 0.0
      %538 = vmatprep.subr.mxu0 0.0
      %539 = vmatpush1.msra.mxu0 0.0
      %540 = vmatprep.subr.mxu0 0.0
      %541 = vmatpush1.msra.mxu0 0.0
      %542 = vmatprep.subr.mxu0 0.0
      %543 = vmatpush1.msra.mxu0 0.0
      %544 = vmatprep.subr.mxu0 0.0
      %545 = vmatpush1.msra.mxu0 0.0
      %546 = vmatprep.subr.mxu0 0.0
      %547 = vmatpush1.msra.mxu0 0.0
      %548 = vmatprep.subr.mxu0 0.0
      %549 = vmatpush1.msra.mxu0 0.0
      %550 = vmatprep.subr.mxu0 0.0
      %551 = vmatpush1.msra.mxu0 0.0
      %552 = vmatprep.subr.mxu0 0.0
      %553 = vmatpush1.msra.mxu0 0.0
      %554 = vmatprep.subr.mxu0 0.0
      %555 = vmatpush1.msra.mxu0 0.0
      %556 = vmatprep.subr.mxu0 0.0
      %557 = vmatpush1.msra.mxu0 0.0
      %558 = vmatprep.subr.mxu0 0.0
      %559 = vmatpush1.msra.mxu0 0.0
      %560 = vmatprep.subr.mxu0 0.0
      %561 = vmatpush1.msra.mxu0 0.0
      %562 = vmatprep.subr.mxu0 0.0
      %563 = vmatpush1.msra.mxu0 0.0
      %564 = vmatprep.subr.mxu0 0.0
      %565 = vmatpush1.msra.mxu0 0.0
      %566 = vmatprep.subr.mxu0 0.0
      %567 = vmatpush1.msra.mxu0 0.0
      %568 = vmatprep.subr.mxu0 0.0
      %569 = vmatpush1.msra.mxu0 0.0
      %570 = vmatprep.subr.mxu0 0.0
      %571 = vmatpush1.msra.mxu0 0.0
      %572 = vmatprep.subr.mxu0 0.0
      %573 = vmatpush1.msra.mxu0 0.0
      %574 = vmatprep.subr.mxu0 0.0
      %575 = vmatpush1.msra.mxu0 0.0
      %576 = vmatprep.subr.mxu0 0.0
      %577 = vmatpush1.msra.mxu0 0.0
      %578 = vmatprep.subr.mxu0 0.0
      %579 = vmatpush1.msra.mxu0 0.0
      %580 = vmatprep.subr.mxu0 0.0
      %581 = vmatpush1.msra.mxu0 0.0
      %582 = vmatprep.subr.mxu0 0.0
      %583 = vmatpush1.msra.mxu0 0.0
      %584 = vmatprep.subr.mxu0 0.0
      %585 = vmatpush1.msra.mxu0 0.0
      %586 = vmatprep.mubr.f32.mxu0 0.0
      %587 = vmatmul.mubr.f32.gmra.mrb[0].mxu0 %v496
      %v588 = vpop.f32.mrb[0].mxu0
      %v589 = vadd.f32 0.0, %v588
      %v590 = vpop.f32.mrb[0].mxu0
      %591 = vmatprep.mubr.f32.mxu0 0.0
      %592 = vmatmul.mubr.f32.gmra.mrb[0].mxu0 %v499
      %v593 = vpop.f32.mrb[0].mxu0
      %v594 = vadd.f32 0.0, %v593
      %v595 = vpop.f32.mrb[0].mxu0
      %596 = vmatprep.mubr.f32.mxu0 0.0
      %597 = vmatmul.mubr.f32.gmra.mrb[0].mxu0 %v502
      %v598 = vpop.f32.mrb[0].mxu0
      %v599 = vadd.f32 0.0, %v598
      %v600 = vpop.f32.mrb[0].mxu0
      %601 = vmatprep.mubr.f32.mxu0 0.0
      %602 = vmatmul.mubr.f32.gmra.mrb[0].mxu0 %v505
      %v603 = vpop.f32.mrb[0].mxu0
      %v604 = vadd.f32 0.0, %v603
      %v605 = vpop.f32.mrb[0].mxu0
      %606 = vmatprep.mubr.f32.mxu0 0.0
      %607 = vmatmul.mubr.f32.gmra.mrb[0].mxu0 %v508
      %v608 = vpop.f32.mrb[0].mxu0
      %v609 = vadd.f32 0.0, %v608
      %v610 = vpop.f32.mrb[0].mxu0
      %611 = vmatprep.mubr.f32.mxu0 0.0
      %612 = vmatmul.mubr.f32.gmra.mrb[0].mxu0 %v511
      %v613 = vpop.f32.mrb[0].mxu0
      %v614 = vadd.f32 0.0, %v613
      %v615 = vpop.f32.mrb[0].mxu0
      %616 = vmatprep.mubr.f32.mxu0 0.0
      %617 = vmatmul.mubr.f32.gmra.mrb[0].mxu0 %v514
      %v618 = vpop.f32.mrb[0].mxu0
      %v619 = vadd.f32 0.0, %v618
      %v620 = vpop.f32.mrb[0].mxu0
      %621 = vmatprep.mubr.f32.mxu0 0.0
      %622 = vmatmul.mubr.f32.gmra.mrb[0].mxu0 %v517
      %v623 = vpop.f32.mrb[0].mxu0
      %v624 = vadd.f32 0.0, %v623
      %v625 = vpop.f32.mrb[0].mxu0
      %626 = vdwg.mxu0
      %v627 = vadd.f32 %v477, %v589
      %v628 = vadd.f32 %v478, %v594
      %v629 = vadd.f32 %v479, %v599
      %v630 = vadd.f32 %v480, %v604
      %v631 = vadd.f32 %v481, %v609
      %v632 = vadd.f32 %v482, %v614
      %v633 = vadd.f32 %v483, %v619
      %v634 = vadd.f32 %v484, %v624
      %s635 = scalar_lea.vmem %s169, 288
      %v636 = vld [vmem:[%s635] sm:$0xff]
      %v637 = vld [vmem:[%s635 + $0x10] sm:$0xff]
      %v638 = vld [vmem:[%s635 + $0x20] sm:$0xff]
      %v639 = vld [vmem:[%s635 + $0x30] sm:$0xff]
      %v640 = vld [vmem:[%s635 + $0x40] sm:$0xff]
      %v641 = vld [vmem:[%s635 + $0x50] sm:$0xff]
      %v642 = vld [vmem:[%s635 + $0x60] sm:$0xff]
      %v643 = vld [vmem:[%s635 + $0x70] sm:$0xff]
      %s644 = scalar_lea.vmem %s1, 12
      %v645 = vld [vmem:[%s644] sm:$0xf]
      %v647 = vsel %vm192, %v636, 0
      %v650 = vsel %vm192, %v637, 0
      %v653 = vsel %vm192, %v638, 0
      %v656 = vsel %vm192, %v639, 0
      %v659 = vsel %vm192, %v640, 0
      %v662 = vsel %vm192, %v641, 0
      %v665 = vsel %vm192, %v642, 0
      %v668 = vsel %vm192, %v643, 0
      %v671 = vsel %vm217, %v645, 0
      %673 = vmatprep.subr.mxu0 0.0
      %674 = vmatpush1.msra.mxu0 %v671
      %675 = vmatprep.subr.mxu0 0.0
      %676 = vmatpush1.msra.mxu0 0.0
      %677 = vmatprep.subr.mxu0 0.0
      %678 = vmatpush1.msra.mxu0 0.0
      %679 = vmatprep.subr.mxu0 0.0
      %680 = vmatpush1.msra.mxu0 0.0
      %681 = vmatprep.subr.mxu0 0.0
      %682 = vmatpush1.msra.mxu0 0.0
      %683 = vmatprep.subr.mxu0 0.0
      %684 = vmatpush1.msra.mxu0 0.0
      %685 = vmatprep.subr.mxu0 0.0
      %686 = vmatpush1.msra.mxu0 0.0
      %687 = vmatprep.subr.mxu0 0.0
      %688 = vmatpush1.msra.mxu0 0.0
      %689 = vmatprep.subr.mxu0 0.0
      %690 = vmatpush1.msra.mxu0 0.0
      %691 = vmatprep.subr.mxu0 0.0
      %692 = vmatpush1.msra.mxu0 0.0
      %693 = vmatprep.subr.mxu0 0.0
      %694 = vmatpush1.msra.mxu0 0.0
      %695 = vmatprep.subr.mxu0 0.0
      %696 = vmatpush1.msra.mxu0 0.0
      %697 = vmatprep.subr.mxu0 0.0
      %698 = vmatpush1.msra.mxu0 0.0
      %699 = vmatprep.subr.mxu0 0.0
      %700 = vmatpush1.msra.mxu0 0.0
      %701 = vmatprep.subr.mxu0 0.0
      %702 = vmatpush1.msra.mxu0 0.0
      %703 = vmatprep.subr.mxu0 0.0
      %704 = vmatpush1.msra.mxu0 0.0
      %705 = vmatprep.subr.mxu0 0.0
      %706 = vmatpush1.msra.mxu0 0.0
      %707 = vmatprep.subr.mxu0 0.0
      %708 = vmatpush1.msra.mxu0 0.0
      %709 = vmatprep.subr.mxu0 0.0
      %710 = vmatpush1.msra.mxu0 0.0
      %711 = vmatprep.subr.mxu0 0.0
      %712 = vmatpush1.msra.mxu0 0.0
      %713 = vmatprep.subr.mxu0 0.0
      %714 = vmatpush1.msra.mxu0 0.0
      %715 = vmatprep.subr.mxu0 0.0
      %716 = vmatpush1.msra.mxu0 0.0
      %717 = vmatprep.subr.mxu0 0.0
      %718 = vmatpush1.msra.mxu0 0.0
      %719 = vmatprep.subr.mxu0 0.0
      %720 = vmatpush1.msra.mxu0 0.0
      %721 = vmatprep.subr.mxu0 0.0
      %722 = vmatpush1.msra.mxu0 0.0
      %723 = vmatprep.subr.mxu0 0.0
      %724 = vmatpush1.msra.mxu0 0.0
      %725 = vmatprep.subr.mxu0 0.0
      %726 = vmatpush1.msra.mxu0 0.0
      %727 = vmatprep.subr.mxu0 0.0
      %728 = vmatpush1.msra.mxu0 0.0
      %729 = vmatprep.subr.mxu0 0.0
      %730 = vmatpush1.msra.mxu0 0.0
      %731 = vmatprep.subr.mxu0 0.0
      %732 = vmatpush1.msra.mxu0 0.0
      %733 = vmatprep.subr.mxu0 0.0
      %734 = vmatpush1.msra.mxu0 0.0
      %735 = vmatprep.subr.mxu0 0.0
      %736 = vmatpush1.msra.mxu0 0.0
      %737 = vmatprep.mubr.f32.mxu0 0.0
      %738 = vmatmul.mubr.f32.gmra.mrb[0].mxu0 %v647
      %v739 = vpop.f32.mrb[0].mxu0
      %v740 = vadd.f32 0.0, %v739
      %v741 = vpop.f32.mrb[0].mxu0
      %742 = vmatprep.mubr.f32.mxu0 0.0
      %743 = vmatmul.mubr.f32.gmra.mrb[0].mxu0 %v650
      %v744 = vpop.f32.mrb[0].mxu0
      %v745 = vadd.f32 0.0, %v744
      %v746 = vpop.f32.mrb[0].mxu0
      %747 = vmatprep.mubr.f32.mxu0 0.0
      %748 = vmatmul.mubr.f32.gmra.mrb[0].mxu0 %v653
      %v749 = vpop.f32.mrb[0].mxu0
      %v750 = vadd.f32 0.0, %v749
      %v751 = vpop.f32.mrb[0].mxu0
      %752 = vmatprep.mubr.f32.mxu0 0.0
      %753 = vmatmul.mubr.f32.gmra.mrb[0].mxu0 %v656
      %v754 = vpop.f32.mrb[0].mxu0
      %v755 = vadd.f32 0.0, %v754
      %v756 = vpop.f32.mrb[0].mxu0
      %757 = vmatprep.mubr.f32.mxu0 0.0
      %758 = vmatmul.mubr.f32.gmra.mrb[0].mxu0 %v659
      %v759 = vpop.f32.mrb[0].mxu0
      %v760 = vadd.f32 0.0, %v759
      %v761 = vpop.f32.mrb[0].mxu0
      %762 = vmatprep.mubr.f32.mxu0 0.0
      %763 = vmatmul.mubr.f32.gmra.mrb[0].mxu0 %v662
      %v764 = vpop.f32.mrb[0].mxu0
      %v765 = vadd.f32 0.0, %v764
      %v766 = vpop.f32.mrb[0].mxu0
      %767 = vmatprep.mubr.f32.mxu0 0.0
      %768 = vmatmul.mubr.f32.gmra.mrb[0].mxu0 %v665
      %v769 = vpop.f32.mrb[0].mxu0
      %v770 = vadd.f32 0.0, %v769
      %v771 = vpop.f32.mrb[0].mxu0
      %772 = vmatprep.mubr.f32.mxu0 0.0
      %773 = vmatmul.mubr.f32.gmra.mrb[0].mxu0 %v668
      %v774 = vpop.f32.mrb[0].mxu0
      %v775 = vadd.f32 0.0, %v774
      %v776 = vpop.f32.mrb[0].mxu0
      %777 = vdwg.mxu0
      %v778 = vadd.f32 %v627, %v740
      %v779 = vadd.f32 %v628, %v745
      %v780 = vadd.f32 %v629, %v750
      %v781 = vadd.f32 %v630, %v755
      %v782 = vadd.f32 %v631, %v760
      %v783 = vadd.f32 %v632, %v765
      %v784 = vadd.f32 %v633, %v770
      %v785 = vadd.f32 %v634, %v775
      %s786 = scalar_lea.vmem %s169, 432
      %v787 = vld [vmem:[%s786] sm:$0xff]
      %v788 = vld [vmem:[%s786 + $0x10] sm:$0xff]
      %v789 = vld [vmem:[%s786 + $0x20] sm:$0xff]
      %v790 = vld [vmem:[%s786 + $0x30] sm:$0xff]
      %v791 = vld [vmem:[%s786 + $0x40] sm:$0xff]
      %v792 = vld [vmem:[%s786 + $0x50] sm:$0xff]
      %v793 = vld [vmem:[%s786 + $0x60] sm:$0xff]
      %v794 = vld [vmem:[%s786 + $0x70] sm:$0xff]
      %s795 = scalar_lea.vmem %s1, 16
      %v796 = vld [vmem:[%s795] sm:$0xf]
      %v798 = vsel %vm192, %v787, 0
      %v801 = vsel %vm192, %v788, 0
      %v804 = vsel %vm192, %v789, 0
      %v807 = vsel %vm192, %v790, 0
      %v810 = vsel %vm192, %v791, 0
      %v813 = vsel %vm192, %v792, 0
      %v816 = vsel %vm192, %v793, 0
      %v819 = vsel %vm192, %v794, 0
      %v822 = vsel %vm217, %v796, 0
      %824 = vmatprep.subr.mxu0 0.0
      %825 = vmatpush1.msra.mxu0 %v822
      %826 = vmatprep.subr.mxu0 0.0
      %827 = vmatpush1.msra.mxu0 0.0
      %828 = vmatprep.subr.mxu0 0.0
      %829 = vmatpush1.msra.mxu0 0.0
      %830 = vmatprep.subr.mxu0 0.0
      %831 = vmatpush1.msra.mxu0 0.0
      %832 = vmatprep.subr.mxu0 0.0
      %833 = vmatpush1.msra.mxu0 0.0
      %834 = vmatprep.subr.mxu0 0.0
      %835 = vmatpush1.msra.mxu0 0.0
      %836 = vmatprep.subr.mxu0 0.0
      %837 = vmatpush1.msra.mxu0 0.0
      %838 = vmatprep.subr.mxu0 0.0
      %839 = vmatpush1.msra.mxu0 0.0
      %840 = vmatprep.subr.mxu0 0.0
      %841 = vmatpush1.msra.mxu0 0.0
      %842 = vmatprep.subr.mxu0 0.0
      %843 = vmatpush1.msra.mxu0 0.0
      %844 = vmatprep.subr.mxu0 0.0
      %845 = vmatpush1.msra.mxu0 0.0
      %846 = vmatprep.subr.mxu0 0.0
      %847 = vmatpush1.msra.mxu0 0.0
      %848 = vmatprep.subr.mxu0 0.0
      %849 = vmatpush1.msra.mxu0 0.0
      %850 = vmatprep.subr.mxu0 0.0
      %851 = vmatpush1.msra.mxu0 0.0
      %852 = vmatprep.subr.mxu0 0.0
      %853 = vmatpush1.msra.mxu0 0.0
      %854 = vmatprep.subr.mxu0 0.0
      %855 = vmatpush1.msra.mxu0 0.0
      %856 = vmatprep.subr.mxu0 0.0
      %857 = vmatpush1.msra.mxu0 0.0
      %858 = vmatprep.subr.mxu0 0.0
      %859 = vmatpush1.msra.mxu0 0.0
      %860 = vmatprep.subr.mxu0 0.0
      %861 = vmatpush1.msra.mxu0 0.0
      %862 = vmatprep.subr.mxu0 0.0
      %863 = vmatpush1.msra.mxu0 0.0
      %864 = vmatprep.subr.mxu0 0.0
      %865 = vmatpush1.msra.mxu0 0.0
      %866 = vmatprep.subr.mxu0 0.0
      %867 = vmatpush1.msra.mxu0 0.0
      %868 = vmatprep.subr.mxu0 0.0
      %869 = vmatpush1.msra.mxu0 0.0
      %870 = vmatprep.subr.mxu0 0.0
      %871 = vmatpush1.msra.mxu0 0.0
      %872 = vmatprep.subr.mxu0 0.0
      %873 = vmatpush1.msra.mxu0 0.0
      %874 = vmatprep.subr.mxu0 0.0
      %875 = vmatpush1.msra.mxu0 0.0
      %876 = vmatprep.subr.mxu0 0.0
      %877 = vmatpush1.msra.mxu0 0.0
      %878 = vmatprep.subr.mxu0 0.0
      %879 = vmatpush1.msra.mxu0 0.0
      %880 = vmatprep.subr.mxu0 0.0
      %881 = vmatpush1.msra.mxu0 0.0
      %882 = vmatprep.subr.mxu0 0.0
      %883 = vmatpush1.msra.mxu0 0.0
      %884 = vmatprep.subr.mxu0 0.0
      %885 = vmatpush1.msra.mxu0 0.0
      %886 = vmatprep.subr.mxu0 0.0
      %887 = vmatpush1.msra.mxu0 0.0
      %888 = vmatprep.mubr.f32.mxu0 0.0
      %889 = vmatmul.mubr.f32.gmra.mrb[0].mxu0 %v798
      %v890 = vpop.f32.mrb[0].mxu0
      %v891 = vadd.f32 0.0, %v890
      %v892 = vpop.f32.mrb[0].mxu0
      %893 = vmatprep.mubr.f32.mxu0 0.0
      %894 = vmatmul.mubr.f32.gmra.mrb[0].mxu0 %v801
      %v895 = vpop.f32.mrb[0].mxu0
      %v896 = vadd.f32 0.0, %v895
      %v897 = vpop.f32.mrb[0].mxu0
      %898 = vmatprep.mubr.f32.mxu0 0.0
      %899 = vmatmul.mubr.f32.gmra.mrb[0].mxu0 %v804
      %v900 = vpop.f32.mrb[0].mxu0
      %v901 = vadd.f32 0.0, %v900
      %v902 = vpop.f32.mrb[0].mxu0
      %903 = vmatprep.mubr.f32.mxu0 0.0
      %904 = vmatmul.mubr.f32.gmra.mrb[0].mxu0 %v807
      %v905 = vpop.f32.mrb[0].mxu0
      %v906 = vadd.f32 0.0, %v905
      %v907 = vpop.f32.mrb[0].mxu0
      %908 = vmatprep.mubr.f32.mxu0 0.0
      %909 = vmatmul.mubr.f32.gmra.mrb[0].mxu0 %v810
      %v910 = vpop.f32.mrb[0].mxu0
      %v911 = vadd.f32 0.0, %v910
      %v912 = vpop.f32.mrb[0].mxu0
      %913 = vmatprep.mubr.f32.mxu0 0.0
      %914 = vmatmul.mubr.f32.gmra.mrb[0].mxu0 %v813
      %v915 = vpop.f32.mrb[0].mxu0
      %v916 = vadd.f32 0.0, %v915
      %v917 = vpop.f32.mrb[0].mxu0
      %918 = vmatprep.mubr.f32.mxu0 0.0
      %919 = vmatmul.mubr.f32.gmra.mrb[0].mxu0 %v816
      %v920 = vpop.f32.mrb[0].mxu0
      %v921 = vadd.f32 0.0, %v920
      %v922 = vpop.f32.mrb[0].mxu0
      %923 = vmatprep.mubr.f32.mxu0 0.0
      %924 = vmatmul.mubr.f32.gmra.mrb[0].mxu0 %v819
      %v925 = vpop.f32.mrb[0].mxu0
      %v926 = vadd.f32 0.0, %v925
      %v927 = vpop.f32.mrb[0].mxu0
      %928 = vdwg.mxu0
      %v929 = vadd.f32 %v778, %v891
      %v930 = vadd.f32 %v779, %v896
      %v931 = vadd.f32 %v780, %v901
      %v932 = vadd.f32 %v781, %v906
      %v933 = vadd.f32 %v782, %v911
      %v934 = vadd.f32 %v783, %v916
      %v935 = vadd.f32 %v784, %v921
      %v936 = vadd.f32 %v785, %v926
      %v937 = vld [vmem:[%s635 + $0x1] sm:$0xff]
      %v938 = vld [vmem:[%s635 + $0x11] sm:$0xff]
      %v939 = vld [vmem:[%s635 + $0x21] sm:$0xff]
      %v940 = vld [vmem:[%s635 + $0x31] sm:$0xff]
      %v941 = vld [vmem:[%s635 + $0x41] sm:$0xff]
      %v942 = vld [vmem:[%s635 + $0x51] sm:$0xff]
      %v943 = vld [vmem:[%s635 + $0x61] sm:$0xff]
      %v944 = vld [vmem:[%s635 + $0x71] sm:$0xff]
      %s945 = scalar_lea.vmem %s1, 20
      %v946 = vld [vmem:[%s945] sm:$0xf]
      %v948 = vsel %vm192, %v937, 0
      %v951 = vsel %vm192, %v938, 0
      %v954 = vsel %vm192, %v939, 0
      %v957 = vsel %vm192, %v940, 0
      %v960 = vsel %vm192, %v941, 0
      %v963 = vsel %vm192, %v942, 0
      %v966 = vsel %vm192, %v943, 0
      %v969 = vsel %vm192, %v944, 0
      %v972 = vsel %vm217, %v946, 0
      %974 = vmatprep.subr.mxu0 0.0
      %975 = vmatpush1.msra.mxu0 %v972
      %976 = vmatprep.subr.mxu0 0.0
      %977 = vmatpush1.msra.mxu0 0.0
      %978 = vmatprep.subr.mxu0 0.0
      %979 = vmatpush1.msra.mxu0 0.0
      %980 = vmatprep.subr.mxu0 0.0
      %981 = vmatpush1.msra.mxu0 0.0
      %982 = vmatprep.subr.mxu0 0.0
      %983 = vmatpush1.msra.mxu0 0.0
      %984 = vmatprep.subr.mxu0 0.0
      %985 = vmatpush1.msra.mxu0 0.0
      %986 = vmatprep.subr.mxu0 0.0
      %987 = vmatpush1.msra.mxu0 0.0
      %988 = vmatprep.subr.mxu0 0.0
      %989 = vmatpush1.msra.mxu0 0.0
      %990 = vmatprep.subr.mxu0 0.0
      %991 = vmatpush1.msra.mxu0 0.0
      %992 = vmatprep.subr.mxu0 0.0
      %993 = vmatpush1.msra.mxu0 0.0
      %994 = vmatprep.subr.mxu0 0.0
      %995 = vmatpush1.msra.mxu0 0.0
      %996 = vmatprep.subr.mxu0 0.0
      %997 = vmatpush1.msra.mxu0 0.0
      %998 = vmatprep.subr.mxu0 0.0
      %999 = vmatpush1.msra.mxu0 0.0
      %1000 = vmatprep.subr.mxu0 0.0
      %1001 = vmatpush1.msra.mxu0 0.0
      %1002 = vmatprep.subr.mxu0 0.0
      %1003 = vmatpush1.msra.mxu0 0.0
      %1004 = vmatprep.subr.mxu0 0.0
      %1005 = vmatpush1.msra.mxu0 0.0
      %1006 = vmatprep.subr.mxu0 0.0
      %1007 = vmatpush1.msra.mxu0 0.0
      %1008 = vmatprep.subr.mxu0 0.0
      %1009 = vmatpush1.msra.mxu0 0.0
      %1010 = vmatprep.subr.mxu0 0.0
      %1011 = vmatpush1.msra.mxu0 0.0
      %1012 = vmatprep.subr.mxu0 0.0
      %1013 = vmatpush1.msra.mxu0 0.0
      %1014 = vmatprep.subr.mxu0 0.0
      %1015 = vmatpush1.msra.mxu0 0.0
      %1016 = vmatprep.subr.mxu0 0.0
      %1017 = vmatpush1.msra.mxu0 0.0
      %1018 = vmatprep.subr.mxu0 0.0
      %1019 = vmatpush1.msra.mxu0 0.0
      %1020 = vmatprep.subr.mxu0 0.0
      %1021 = vmatpush1.msra.mxu0 0.0
      %1022 = vmatprep.subr.mxu0 0.0
      %1023 = vmatpush1.msra.mxu0 0.0
      %1024 = vmatprep.subr.mxu0 0.0
      %1025 = vmatpush1.msra.mxu0 0.0
      %1026 = vmatprep.subr.mxu0 0.0
      %1027 = vmatpush1.msra.mxu0 0.0
      %1028 = vmatprep.subr.mxu0 0.0
      %1029 = vmatpush1.msra.mxu0 0.0
      %1030 = vmatprep.subr.mxu0 0.0
      %1031 = vmatpush1.msra.mxu0 0.0
      %1032 = vmatprep.subr.mxu0 0.0
      %1033 = vmatpush1.msra.mxu0 0.0
      %1034 = vmatprep.subr.mxu0 0.0
      %1035 = vmatpush1.msra.mxu0 0.0
      %1036 = vmatprep.subr.mxu0 0.0
      %1037 = vmatpush1.msra.mxu0 0.0
      %1038 = vmatprep.mubr.f32.mxu0 0.0
      %1039 = vmatmul.mubr.f32.gmra.mrb[0].mxu0 %v948
      %v1040 = vpop.f32.mrb[0].mxu0
      %v1041 = vadd.f32 0.0, %v1040
      %v1042 = vpop.f32.mrb[0].mxu0
      %1043 = vmatprep.mubr.f32.mxu0 0.0
      %1044 = vmatmul.mubr.f32.gmra.mrb[0].mxu0 %v951
      %v1045 = vpop.f32.mrb[0].mxu0
      %v1046 = vadd.f32 0.0, %v1045
      %v1047 = vpop.f32.mrb[0].mxu0
      %1048 = vmatprep.mubr.f32.mxu0 0.0
      %1049 = vmatmul.mubr.f32.gmra.mrb[0].mxu0 %v954
      %v1050 = vpop.f32.mrb[0].mxu0
      %v1051 = vadd.f32 0.0, %v1050
      %v1052 = vpop.f32.mrb[0].mxu0
      %1053 = vmatprep.mubr.f32.mxu0 0.0
      %1054 = vmatmul.mubr.f32.gmra.mrb[0].mxu0 %v957
      %v1055 = vpop.f32.mrb[0].mxu0
      %v1056 = vadd.f32 0.0, %v1055
      %v1057 = vpop.f32.mrb[0].mxu0
      %1058 = vmatprep.mubr.f32.mxu0 0.0
      %1059 = vmatmul.mubr.f32.gmra.mrb[0].mxu0 %v960
      %v1060 = vpop.f32.mrb[0].mxu0
      %v1061 = vadd.f32 0.0, %v1060
      %v1062 = vpop.f32.mrb[0].mxu0
      %1063 = vmatprep.mubr.f32.mxu0 0.0
      %1064 = vmatmul.mubr.f32.gmra.mrb[0].mxu0 %v963
      %v1065 = vpop.f32.mrb[0].mxu0
      %v1066 = vadd.f32 0.0, %v1065
      %v1067 = vpop.f32.mrb[0].mxu0
      %1068 = vmatprep.mubr.f32.mxu0 0.0
      %1069 = vmatmul.mubr.f32.gmra.mrb[0].mxu0 %v966
      %v1070 = vpop.f32.mrb[0].mxu0
      %v1071 = vadd.f32 0.0, %v1070
      %v1072 = vpop.f32.mrb[0].mxu0
      %1073 = vmatprep.mubr.f32.mxu0 0.0
      %1074 = vmatmul.mubr.f32.gmra.mrb[0].mxu0 %v969
      %v1075 = vpop.f32.mrb[0].mxu0
      %v1076 = vadd.f32 0.0, %v1075
      %v1077 = vpop.f32.mrb[0].mxu0
      %1078 = vdwg.mxu0
      %v1079 = vadd.f32 %v929, %v1041
      %v1080 = vadd.f32 %v930, %v1046
      %v1081 = vadd.f32 %v931, %v1051
      %v1082 = vadd.f32 %v932, %v1056
      %v1083 = vadd.f32 %v933, %v1061
      %v1084 = vadd.f32 %v934, %v1066
      %v1085 = vadd.f32 %v935, %v1071
      %v1086 = vadd.f32 %v936, %v1076
      %s1087 = scalar_lea.vmem %s169, 16
      %v1088 = vld [vmem:[%s1087] sm:$0xff]
      %v1089 = vld [vmem:[%s1087 + $0x10] sm:$0xff]
      %v1090 = vld [vmem:[%s1087 + $0x20] sm:$0xff]
      %v1091 = vld [vmem:[%s1087 + $0x30] sm:$0xff]
      %v1092 = vld [vmem:[%s1087 + $0x40] sm:$0xff]
      %v1093 = vld [vmem:[%s1087 + $0x50] sm:$0xff]
      %v1094 = vld [vmem:[%s1087 + $0x60] sm:$0xff]
      %v1095 = vld [vmem:[%s1087 + $0x70] sm:$0xff]
      %s1096 = scalar_lea.vmem %s1, 24
      %v1097 = vld [vmem:[%s1096] sm:$0xf]
      %v1099 = vsel %vm192, %v1088, 0
      %v1102 = vsel %vm192, %v1089, 0
      %v1105 = vsel %vm192, %v1090, 0
      %v1108 = vsel %vm192, %v1091, 0
      %v1111 = vsel %vm192, %v1092, 0
      %v1114 = vsel %vm192, %v1093, 0
      %v1117 = vsel %vm192, %v1094, 0
      %v1120 = vsel %vm192, %v1095, 0
      %v1123 = vsel %vm217, %v1097, 0
      %1125 = vmatprep.subr.mxu0 0.0
      %1126 = vmatpush1.msra.mxu0 %v1123
      %1127 = vmatprep.subr.mxu0 0.0
      %1128 = vmatpush1.msra.mxu0 0.0
      %1129 = vmatprep.subr.mxu0 0.0
      %1130 = vmatpush1.msra.mxu0 0.0
      %1131 = vmatprep.subr.mxu0 0.0
      %1132 = vmatpush1.msra.mxu0 0.0
      %1133 = vmatprep.subr.mxu0 0.0
      %1134 = vmatpush1.msra.mxu0 0.0
      %1135 = vmatprep.subr.mxu0 0.0
      %1136 = vmatpush1.msra.mxu0 0.0
      %1137 = vmatprep.subr.mxu0 0.0
      %1138 = vmatpush1.msra.mxu0 0.0
      %1139 = vmatprep.subr.mxu0 0.0
      %1140 = vmatpush1.msra.mxu0 0.0
      %1141 = vmatprep.subr.mxu0 0.0
      %1142 = vmatpush1.msra.mxu0 0.0
      %1143 = vmatprep.subr.mxu0 0.0
      %1144 = vmatpush1.msra.mxu0 0.0
      %1145 = vmatprep.subr.mxu0 0.0
      %1146 = vmatpush1.msra.mxu0 0.0
      %1147 = vmatprep.subr.mxu0 0.0
      %1148 = vmatpush1.msra.mxu0 0.0
      %1149 = vmatprep.subr.mxu0 0.0
      %1150 = vmatpush1.msra.mxu0 0.0
      %1151 = vmatprep.subr.mxu0 0.0
      %1152 = vmatpush1.msra.mxu0 0.0
      %1153 = vmatprep.subr.mxu0 0.0
      %1154 = vmatpush1.msra.mxu0 0.0
      %1155 = vmatprep.subr.mxu0 0.0
      %1156 = vmatpush1.msra.mxu0 0.0
      %1157 = vmatprep.subr.mxu0 0.0
      %1158 = vmatpush1.msra.mxu0 0.0
      %1159 = vmatprep.subr.mxu0 0.0
      %1160 = vmatpush1.msra.mxu0 0.0
      %1161 = vmatprep.subr.mxu0 0.0
      %1162 = vmatpush1.msra.mxu0 0.0
      %1163 = vmatprep.subr.mxu0 0.0
      %1164 = vmatpush1.msra.mxu0 0.0
      %1165 = vmatprep.subr.mxu0 0.0
      %1166 = vmatpush1.msra.mxu0 0.0
      %1167 = vmatprep.subr.mxu0 0.0
      %1168 = vmatpush1.msra.mxu0 0.0
      %1169 = vmatprep.subr.mxu0 0.0
      %1170 = vmatpush1.msra.mxu0 0.0
      %1171 = vmatprep.subr.mxu0 0.0
      %1172 = vmatpush1.msra.mxu0 0.0
      %1173 = vmatprep.subr.mxu0 0.0
      %1174 = vmatpush1.msra.mxu0 0.0
      %1175 = vmatprep.subr.mxu0 0.0
      %1176 = vmatpush1.msra.mxu0 0.0
      %1177 = vmatprep.subr.mxu0 0.0
      %1178 = vmatpush1.msra.mxu0 0.0
      %1179 = vmatprep.subr.mxu0 0.0
      %1180 = vmatpush1.msra.mxu0 0.0
      %1181 = vmatprep.subr.mxu0 0.0
      %1182 = vmatpush1.msra.mxu0 0.0
      %1183 = vmatprep.subr.mxu0 0.0
      %1184 = vmatpush1.msra.mxu0 0.0
      %1185 = vmatprep.subr.mxu0 0.0
      %1186 = vmatpush1.msra.mxu0 0.0
      %1187 = vmatprep.subr.mxu0 0.0
      %1188 = vmatpush1.msra.mxu0 0.0
      %1189 = vmatprep.mubr.f32.mxu0 0.0
      %1190 = vmatmul.mubr.f32.gmra.mrb[0].mxu0 %v1099
      %v1191 = vpop.f32.mrb[0].mxu0
      %v1192 = vadd.f32 0.0, %v1191
      %v1193 = vpop.f32.mrb[0].mxu0
      %1194 = vmatprep.mubr.f32.mxu0 0.0
      %1195 = vmatmul.mubr.f32.gmra.mrb[0].mxu0 %v1102
      %v1196 = vpop.f32.mrb[0].mxu0
      %v1197 = vadd.f32 0.0, %v1196
      %v1198 = vpop.f32.mrb[0].mxu0
      %1199 = vmatprep.mubr.f32.mxu0 0.0
      %1200 = vmatmul.mubr.f32.gmra.mrb[0].mxu0 %v1105
      %v1201 = vpop.f32.mrb[0].mxu0
      %v1202 = vadd.f32 0.0, %v1201
      %v1203 = vpop.f32.mrb[0].mxu0
      %1204 = vmatprep.mubr.f32.mxu0 0.0
      %1205 = vmatmul.mubr.f32.gmra.mrb[0].mxu0 %v1108
      %v1206 = vpop.f32.mrb[0].mxu0
      %v1207 = vadd.f32 0.0, %v1206
      %v1208 = vpop.f32.mrb[0].mxu0
      %1209 = vmatprep.mubr.f32.mxu0 0.0
      %1210 = vmatmul.mubr.f32.gmra.mrb[0].mxu0 %v1111
      %v1211 = vpop.f32.mrb[0].mxu0
      %v1212 = vadd.f32 0.0, %v1211
      %v1213 = vpop.f32.mrb[0].mxu0
      %1214 = vmatprep.mubr.f32.mxu0 0.0
      %1215 = vmatmul.mubr.f32.gmra.mrb[0].mxu0 %v1114
      %v1216 = vpop.f32.mrb[0].mxu0
      %v1217 = vadd.f32 0.0, %v1216
      %v1218 = vpop.f32.mrb[0].mxu0
      %1219 = vmatprep.mubr.f32.mxu0 0.0
      %1220 = vmatmul.mubr.f32.gmra.mrb[0].mxu0 %v1117
      %v1221 = vpop.f32.mrb[0].mxu0
      %v1222 = vadd.f32 0.0, %v1221
      %v1223 = vpop.f32.mrb[0].mxu0
      %1224 = vmatprep.mubr.f32.mxu0 0.0
      %1225 = vmatmul.mubr.f32.gmra.mrb[0].mxu0 %v1120
      %v1226 = vpop.f32.mrb[0].mxu0
      %v1227 = vadd.f32 0.0, %v1226
      %v1228 = vpop.f32.mrb[0].mxu0
      %1229 = vdwg.mxu0
      %v1230 = vadd.f32 %v1079, %v1192
      %v1231 = vadd.f32 %v1080, %v1197
      %v1232 = vadd.f32 %v1081, %v1202
      %v1233 = vadd.f32 %v1082, %v1207
      %v1234 = vadd.f32 %v1083, %v1212
      %v1235 = vadd.f32 %v1084, %v1217
      %v1236 = vadd.f32 %v1085, %v1222
      %v1237 = vadd.f32 %v1086, %v1227
      %s1238 = scalar_lea.vmem %s169, 160
      %v1239 = vld [vmem:[%s1238] sm:$0xff]
      %v1240 = vld [vmem:[%s1238 + $0x10] sm:$0xff]
      %v1241 = vld [vmem:[%s1238 + $0x20] sm:$0xff]
      %v1242 = vld [vmem:[%s1238 + $0x30] sm:$0xff]
      %v1243 = vld [vmem:[%s1238 + $0x40] sm:$0xff]
      %v1244 = vld [vmem:[%s1238 + $0x50] sm:$0xff]
      %v1245 = vld [vmem:[%s1238 + $0x60] sm:$0xff]
      %v1246 = vld [vmem:[%s1238 + $0x70] sm:$0xff]
      %s1247 = scalar_lea.vmem %s1, 28
      %v1248 = vld [vmem:[%s1247] sm:$0xf]
      %v1250 = vsel %vm192, %v1239, 0
      %v1253 = vsel %vm192, %v1240, 0
      %v1256 = vsel %vm192, %v1241, 0
      %v1259 = vsel %vm192, %v1242, 0
      %v1262 = vsel %vm192, %v1243, 0
      %v1265 = vsel %vm192, %v1244, 0
      %v1268 = vsel %vm192, %v1245, 0
      %v1271 = vsel %vm192, %v1246, 0
      %v1274 = vsel %vm217, %v1248, 0
      %1276 = vmatprep.subr.mxu0 0.0
      %1277 = vmatpush1.msra.mxu0 %v1274
      %1278 = vmatprep.subr.mxu0 0.0
      %1279 = vmatpush1.msra.mxu0 0.0
      %1280 = vmatprep.subr.mxu0 0.0
      %1281 = vmatpush1.msra.mxu0 0.0
      %1282 = vmatprep.subr.mxu0 0.0
      %1283 = vmatpush1.msra.mxu0 0.0
      %1284 = vmatprep.subr.mxu0 0.0
      %1285 = vmatpush1.msra.mxu0 0.0
      %1286 = vmatprep.subr.mxu0 0.0
      %1287 = vmatpush1.msra.mxu0 0.0
      %1288 = vmatprep.subr.mxu0 0.0
      %1289 = vmatpush1.msra.mxu0 0.0
      %1290 = vmatprep.subr.mxu0 0.0
      %1291 = vmatpush1.msra.mxu0 0.0
      %1292 = vmatprep.subr.mxu0 0.0
      %1293 = vmatpush1.msra.mxu0 0.0
      %1294 = vmatprep.subr.mxu0 0.0
      %1295 = vmatpush1.msra.mxu0 0.0
      %1296 = vmatprep.subr.mxu0 0.0
      %1297 = vmatpush1.msra.mxu0 0.0
      %1298 = vmatprep.subr.mxu0 0.0
      %1299 = vmatpush1.msra.mxu0 0.0
      %1300 = vmatprep.subr.mxu0 0.0
      %1301 = vmatpush1.msra.mxu0 0.0
      %1302 = vmatprep.subr.mxu0 0.0
      %1303 = vmatpush1.msra.mxu0 0.0
      %1304 = vmatprep.subr.mxu0 0.0
      %1305 = vmatpush1.msra.mxu0 0.0
      %1306 = vmatprep.subr.mxu0 0.0
      %1307 = vmatpush1.msra.mxu0 0.0
      %1308 = vmatprep.subr.mxu0 0.0
      %1309 = vmatpush1.msra.mxu0 0.0
      %1310 = vmatprep.subr.mxu0 0.0
      %1311 = vmatpush1.msra.mxu0 0.0
      %1312 = vmatprep.subr.mxu0 0.0
      %1313 = vmatpush1.msra.mxu0 0.0
      %1314 = vmatprep.subr.mxu0 0.0
      %1315 = vmatpush1.msra.mxu0 0.0
      %1316 = vmatprep.subr.mxu0 0.0
      %1317 = vmatpush1.msra.mxu0 0.0
      %1318 = vmatprep.subr.mxu0 0.0
      %1319 = vmatpush1.msra.mxu0 0.0
      %1320 = vmatprep.subr.mxu0 0.0
      %1321 = vmatpush1.msra.mxu0 0.0
      %1322 = vmatprep.subr.mxu0 0.0
      %1323 = vmatpush1.msra.mxu0 0.0
      %1324 = vmatprep.subr.mxu0 0.0
      %1325 = vmatpush1.msra.mxu0 0.0
      %1326 = vmatprep.subr.mxu0 0.0
      %1327 = vmatpush1.msra.mxu0 0.0
      %1328 = vmatprep.subr.mxu0 0.0
      %1329 = vmatpush1.msra.mxu0 0.0
      %1330 = vmatprep.subr.mxu0 0.0
      %1331 = vmatpush1.msra.mxu0 0.0
      %1332 = vmatprep.subr.mxu0 0.0
      %1333 = vmatpush1.msra.mxu0 0.0
      %1334 = vmatprep.subr.mxu0 0.0
      %1335 = vmatpush1.msra.mxu0 0.0
      %1336 = vmatprep.subr.mxu0 0.0
      %1337 = vmatpush1.msra.mxu0 0.0
      %1338 = vmatprep.subr.mxu0 0.0
      %1339 = vmatpush1.msra.mxu0 0.0
      %1340 = vmatprep.mubr.f32.mxu0 0.0
      %1341 = vmatmul.mubr.f32.gmra.mrb[0].mxu0 %v1250
      %v1342 = vpop.f32.mrb[0].mxu0
      %v1343 = vadd.f32 0.0, %v1342
      %v1344 = vpop.f32.mrb[0].mxu0
      %1345 = vmatprep.mubr.f32.mxu0 0.0
      %1346 = vmatmul.mubr.f32.gmra.mrb[0].mxu0 %v1253
      %v1347 = vpop.f32.mrb[0].mxu0
      %v1348 = vadd.f32 0.0, %v1347
      %v1349 = vpop.f32.mrb[0].mxu0
      %1350 = vmatprep.mubr.f32.mxu0 0.0
      %1351 = vmatmul.mubr.f32.gmra.mrb[0].mxu0 %v1256
      %v1352 = vpop.f32.mrb[0].mxu0
      %v1353 = vadd.f32 0.0, %v1352
      %v1354 = vpop.f32.mrb[0].mxu0
      %1355 = vmatprep.mubr.f32.mxu0 0.0
      %1356 = vmatmul.mubr.f32.gmra.mrb[0].mxu0 %v1259
      %v1357 = vpop.f32.mrb[0].mxu0
      %v1358 = vadd.f32 0.0, %v1357
      %v1359 = vpop.f32.mrb[0].mxu0
      %1360 = vmatprep.mubr.f32.mxu0 0.0
      %1361 = vmatmul.mubr.f32.gmra.mrb[0].mxu0 %v1262
      %v1362 = vpop.f32.mrb[0].mxu0
      %v1363 = vadd.f32 0.0, %v1362
      %v1364 = vpop.f32.mrb[0].mxu0
      %1365 = vmatprep.mubr.f32.mxu0 0.0
      %1366 = vmatmul.mubr.f32.gmra.mrb[0].mxu0 %v1265
      %v1367 = vpop.f32.mrb[0].mxu0
      %v1368 = vadd.f32 0.0, %v1367
      %v1369 = vpop.f32.mrb[0].mxu0
      %1370 = vmatprep.mubr.f32.mxu0 0.0
      %1371 = vmatmul.mubr.f32.gmra.mrb[0].mxu0 %v1268
      %v1372 = vpop.f32.mrb[0].mxu0
      %v1373 = vadd.f32 0.0, %v1372
      %v1374 = vpop.f32.mrb[0].mxu0
      %1375 = vmatprep.mubr.f32.mxu0 0.0
      %1376 = vmatmul.mubr.f32.gmra.mrb[0].mxu0 %v1271
      %v1377 = vpop.f32.mrb[0].mxu0
      %v1378 = vadd.f32 0.0, %v1377
      %v1379 = vpop.f32.mrb[0].mxu0
      %1380 = vdwg.mxu0
      %v1381 = vadd.f32 %v1230, %v1343
      %v1382 = vadd.f32 %v1231, %v1348
      %v1383 = vadd.f32 %v1232, %v1353
      %v1384 = vadd.f32 %v1233, %v1358
      %v1385 = vadd.f32 %v1234, %v1363
      %v1386 = vadd.f32 %v1235, %v1368
      %v1387 = vadd.f32 %v1236, %v1373
      %v1388 = vadd.f32 %v1237, %v1378
      %v1389 = vld [vmem:[%s1087 + $0x1] sm:$0xff]
      %v1390 = vld [vmem:[%s1087 + $0x11] sm:$0xff]
      %v1391 = vld [vmem:[%s1087 + $0x21] sm:$0xff]
      %v1392 = vld [vmem:[%s1087 + $0x31] sm:$0xff]
      %v1393 = vld [vmem:[%s1087 + $0x41] sm:$0xff]
      %v1394 = vld [vmem:[%s1087 + $0x51] sm:$0xff]
      %v1395 = vld [vmem:[%s1087 + $0x61] sm:$0xff]
      %v1396 = vld [vmem:[%s1087 + $0x71] sm:$0xff]
      %s1397 = scalar_lea.vmem %s1, 32
      %v1398 = vld [vmem:[%s1397] sm:$0xf]
      %v1400 = vsel %vm192, %v1389, 0
      %v1403 = vsel %vm192, %v1390, 0
      %v1406 = vsel %vm192, %v1391, 0
      %v1409 = vsel %vm192, %v1392, 0
      %v1412 = vsel %vm192, %v1393, 0
      %v1415 = vsel %vm192, %v1394, 0
      %v1418 = vsel %vm192, %v1395, 0
      %v1421 = vsel %vm192, %v1396, 0
      %v1424 = vsel %vm217, %v1398, 0
      %1426 = vmatprep.subr.mxu0 0.0
      %1427 = vmatpush1.msra.mxu0 %v1424
      %1428 = vmatprep.subr.mxu0 0.0
      %1429 = vmatpush1.msra.mxu0 0.0
      %1430 = vmatprep.subr.mxu0 0.0
      %1431 = vmatpush1.msra.mxu0 0.0
      %1432 = vmatprep.subr.mxu0 0.0
      %1433 = vmatpush1.msra.mxu0 0.0
      %1434 = vmatprep.subr.mxu0 0.0
      %1435 = vmatpush1.msra.mxu0 0.0
      %1436 = vmatprep.subr.mxu0 0.0
      %1437 = vmatpush1.msra.mxu0 0.0
      %1438 = vmatprep.subr.mxu0 0.0
      %1439 = vmatpush1.msra.mxu0 0.0
      %1440 = vmatprep.subr.mxu0 0.0
      %1441 = vmatpush1.msra.mxu0 0.0
      %1442 = vmatprep.subr.mxu0 0.0
      %1443 = vmatpush1.msra.mxu0 0.0
      %1444 = vmatprep.subr.mxu0 0.0
      %1445 = vmatpush1.msra.mxu0 0.0
      %1446 = vmatprep.subr.mxu0 0.0
      %1447 = vmatpush1.msra.mxu0 0.0
      %1448 = vmatprep.subr.mxu0 0.0
      %1449 = vmatpush1.msra.mxu0 0.0
      %1450 = vmatprep.subr.mxu0 0.0
      %1451 = vmatpush1.msra.mxu0 0.0
      %1452 = vmatprep.subr.mxu0 0.0
      %1453 = vmatpush1.msra.mxu0 0.0
      %1454 = vmatprep.subr.mxu0 0.0
      %1455 = vmatpush1.msra.mxu0 0.0
      %1456 = vmatprep.subr.mxu0 0.0
      %1457 = vmatpush1.msra.mxu0 0.0
      %1458 = vmatprep.subr.mxu0 0.0
      %1459 = vmatpush1.msra.mxu0 0.0
      %1460 = vmatprep.subr.mxu0 0.0
      %1461 = vmatpush1.msra.mxu0 0.0
      %1462 = vmatprep.subr.mxu0 0.0
      %1463 = vmatpush1.msra.mxu0 0.0
      %1464 = vmatprep.subr.mxu0 0.0
      %1465 = vmatpush1.msra.mxu0 0.0
      %1466 = vmatprep.subr.mxu0 0.0
      %1467 = vmatpush1.msra.mxu0 0.0
      %1468 = vmatprep.subr.mxu0 0.0
      %1469 = vmatpush1.msra.mxu0 0.0
      %1470 = vmatprep.subr.mxu0 0.0
      %1471 = vmatpush1.msra.mxu0 0.0
      %1472 = vmatprep.subr.mxu0 0.0
      %1473 = vmatpush1.msra.mxu0 0.0
      %1474 = vmatprep.subr.mxu0 0.0
      %1475 = vmatpush1.msra.mxu0 0.0
      %1476 = vmatprep.subr.mxu0 0.0
      %1477 = vmatpush1.msra.mxu0 0.0
      %1478 = vmatprep.subr.mxu0 0.0
      %1479 = vmatpush1.msra.mxu0 0.0
      %1480 = vmatprep.subr.mxu0 0.0
      %1481 = vmatpush1.msra.mxu0 0.0
      %1482 = vmatprep.subr.mxu0 0.0
      %1483 = vmatpush1.msra.mxu0 0.0
      %1484 = vmatprep.subr.mxu0 0.0
      %1485 = vmatpush1.msra.mxu0 0.0
      %1486 = vmatprep.subr.mxu0 0.0
      %1487 = vmatpush1.msra.mxu0 0.0
      %1488 = vmatprep.subr.mxu0 0.0
      %1489 = vmatpush1.msra.mxu0 0.0
      %1490 = vmatprep.mubr.f32.mxu0 0.0
      %1491 = vmatmul.mubr.f32.gmra.mrb[0].mxu0 %v1400
      %v1492 = vpop.f32.mrb[0].mxu0
      %v1493 = vadd.f32 0.0, %v1492
      %v1494 = vpop.f32.mrb[0].mxu0
      %1495 = vmatprep.mubr.f32.mxu0 0.0
      %1496 = vmatmul.mubr.f32.gmra.mrb[0].mxu0 %v1403
      %v1497 = vpop.f32.mrb[0].mxu0
      %v1498 = vadd.f32 0.0, %v1497
      %v1499 = vpop.f32.mrb[0].mxu0
      %1500 = vmatprep.mubr.f32.mxu0 0.0
      %1501 = vmatmul.mubr.f32.gmra.mrb[0].mxu0 %v1406
      %v1502 = vpop.f32.mrb[0].mxu0
      %v1503 = vadd.f32 0.0, %v1502
      %v1504 = vpop.f32.mrb[0].mxu0
      %1505 = vmatprep.mubr.f32.mxu0 0.0
      %1506 = vmatmul.mubr.f32.gmra.mrb[0].mxu0 %v1409
      %v1507 = vpop.f32.mrb[0].mxu0
      %v1508 = vadd.f32 0.0, %v1507
      %v1509 = vpop.f32.mrb[0].mxu0
      %1510 = vmatprep.mubr.f32.mxu0 0.0
      %1511 = vmatmul.mubr.f32.gmra.mrb[0].mxu0 %v1412
      %v1512 = vpop.f32.mrb[0].mxu0
      %v1513 = vadd.f32 0.0, %v1512
      %v1514 = vpop.f32.mrb[0].mxu0
      %1515 = vmatprep.mubr.f32.mxu0 0.0
      %1516 = vmatmul.mubr.f32.gmra.mrb[0].mxu0 %v1415
      %v1517 = vpop.f32.mrb[0].mxu0
      %v1518 = vadd.f32 0.0, %v1517
      %v1519 = vpop.f32.mrb[0].mxu0
      %1520 = vmatprep.mubr.f32.mxu0 0.0
      %1521 = vmatmul.mubr.f32.gmra.mrb[0].mxu0 %v1418
      %v1522 = vpop.f32.mrb[0].mxu0
      %v1523 = vadd.f32 0.0, %v1522
      %v1524 = vpop.f32.mrb[0].mxu0
      %1525 = vmatprep.mubr.f32.mxu0 0.0
      %1526 = vmatmul.mubr.f32.gmra.mrb[0].mxu0 %v1421
      %v1527 = vpop.f32.mrb[0].mxu0
      %v1528 = vadd.f32 0.0, %v1527
      %v1529 = vpop.f32.mrb[0].mxu0
      %1530 = vdwg.mxu0
      %v1531 = vadd.f32 %v1381, %v1493
      %v1532 = vadd.f32 %v1382, %v1498
      %v1533 = vadd.f32 %v1383, %v1503
      %v1534 = vadd.f32 %v1384, %v1508
      %v1535 = vadd.f32 %v1385, %v1513
      %v1536 = vadd.f32 %v1386, %v1518
      %v1537 = vadd.f32 %v1387, %v1523
      %v1538 = vadd.f32 %v1388, %v1528
      %1539 = vst [vmem:[%s175] sm:$0xff] %v1531
      %1540 = vst [vmem:[%s175 + $0x8] sm:$0xff] %v1532
      %1541 = vst [vmem:[%s175 + $0x10] sm:$0xff] %v1533
      %1542 = vst [vmem:[%s175 + $0x18] sm:$0xff] %v1534
      %1543 = vst [vmem:[%s175 + $0x20] sm:$0xff] %v1535
      %1544 = vst [vmem:[%s175 + $0x28] sm:$0xff] %v1536
      %1545 = vst [vmem:[%s175 + $0x30] sm:$0xff] %v1537
      %1546 = vst [vmem:[%s175 + $0x38] sm:$0xff] %v1538
      %p1547 = scmp.lt.s32.totalorder %s14, 1
      %s1548 = scalar_select %p1547, %s14, 1
      %s1549 = smul.addr %s1548, 8
      %s1550 = smul.addr %s1549, 8
      %s1551 = scalar_lea.vmem %s3, %s1550
      // Predicated region
      $region33: #{_lambda_.1} parent=31 // pred_check
        %p1552 = pneg %p100
      $region34: #{_lambda_.1} parent=31 // pred_check_branch
        %1554 = sbr.rel (%p1552) target = $region36
      $region35: #{_lambda_.1} parent=31 // pred_region
        _
      $region36: #{_lambda_.1} parent=31 // pred_fallthru
        _
    $region32: #{_lambda_.1} parent=5 // pred_fallthru
      _
    %p1555 = scmp.le.s32.totalorder 2, %s9
    // Predicated region
    $region37: #{_lambda_.1} parent=5 // pred_check
      %p1556 = pneg %p1555
    $region38: #{_lambda_.1} parent=5 // pred_check_branch
      %1558 = sbr.rel (%p1556) target = $region40
    $region39: #{_lambda_.1} parent=5 // pred_region
      %s1559 = ssub.s32 %s9, 2
      // Predicated region
      $region41: #{_lambda_.1} parent=39 // pred_check
        %p1560 = pneg %p106
      $region42: #{_lambda_.1} parent=39 // pred_check_branch
        %1562 = sbr.rel (%p1560) target = $region44
      $region43: #{_lambda_.1} parent=39 // pred_region
        %p1563 = scmp.lt.s32.totalorder %s15, 1
        %s1564 = scalar_select %p1563, %s15, 1
        %s1565 = smul.addr %s1564, 8
        %s1566 = smul.addr %s1565, 8
        %s1567 = scalar_lea.vmem %s3, %s1566
      $region44: #{_lambda_.1} parent=39 // pred_fallthru
        _
    $region40: #{_lambda_.1} parent=5 // pred_fallthru
      _
  $region6: #{_lambda_.1} parent=0 // loop_footer
    %s13 = sadd.s32 1, %s9
  $region7: #{_lambda_.1} parent=0 // loop_footer_branch
    %8 = sbr.rel target = $region3
  $region8: #{_lambda_.1} parent=0 // loop_exit
    _

</llo_original>
